<compile_context>
chip_gen: v6e
topology: v6e:2x2x1
jax: 0.10.0
libtpu: 0.0.40
codegen_flags: <defaults>
</compile_context>

<pallas_src>
import jax
import jax.numpy as jnp
import numpy as np
from jax import lax
from jax.experimental import pallas as pl
from jax.experimental.pallas import tpu as pltpu


def patch_embed_kernel(x_ref, w_ref, b_ref, o_ref):
    # x_ref: (C, Lext)   zero-extended padded-flat image (one batch element),
    #                    Lext = Hp*Wp + 2*(Wp+1), compute dtype (bf16 by default)
    # w_ref: (9, TE, C)  per-tap packed conv weights, tap index t = kh*3 + kw
    # b_ref: (TE, 1)     f32 bias
    # o_ref: (TE, L)     output tile in padded-flat layout, L = Hp*Wp
    L = o_ref.shape[-1]
    Lext = x_ref.shape[-1]
    Wp = (Lext - L) // 2 - 1          # padded image width (flat margin = Wp + 1)

    acc = jnp.zeros(o_ref.shape, jnp.float32)
    # Static 9-tap unroll: each tap is a static lane-slice of the VMEM block
    # (offset = margin + (kh-1)*Wp + (kw-1) = kh*Wp + kw >= 0, end <= Lext),
    # fed straight into a small MXU matmul with f32 accumulation.
    for kh in range(3):
        for kw in range(3):
            off = kh * Wp + kw
            xs = x_ref[:, off:off + L]                         # (C, L)
            acc = acc + jnp.dot(w_ref[3 * kh + kw], xs,
                                preferred_element_type=jnp.float32)
    o_ref[...] = (acc + b_ref[...]).astype(o_ref.dtype)


def _pick_te(E):
    # Output-channel tile: full E when small; otherwise a multiple-of-8 divisor
    # so the (TE, L) tile stays modest and adds grid parallelism for large E.
    if E <= 256:
        return E
    for te in (256, 128, 64, 32, 16, 8):
        if E % te == 0:
            return te
    return E


def patch_embed(x_nchw, weight_oihw, bias, *, compute_dtype=jnp.bfloat16):
    """x_nchw: (B, C, H, W); weight_oihw: (E, C, 3, 3); bias: (E,).
    Returns (B, H*W, E), matching PyTorch's proj(x).flatten(2).transpose(1, 2)."""
    B, C, H, W = x_nchw.shape
    E = weight_oihw.shape[0]
    Hp, Wp = H + 2, W + 2
    L = Hp * Wp                    # padded-flat spatial length per image
    m = Wp + 1                     # flat margin so every tap offset is non-negative
    Lext = L + 2 * m

    # ---- ~1x-input wrapper glue (pad + flatten, fused by XLA into one pass) ----
    x_pad = jnp.pad(x_nchw, ((0, 0), (0, 0), (1, 1), (1, 1)))          # (B,C,Hp,Wp)
    x_ext = jnp.pad(x_pad.reshape(B, C, L), ((0, 0), (0, 0), (m, m)))  # (B,C,Lext)
    x_ext = x_ext.astype(compute_dtype)

    # Per-tap weights (9, E, C): w_taps[kh*3+kw, e, c] = weight[e, c, kh, kw].
    w_taps = jnp.transpose(weight_oihw, (2, 3, 0, 1)).reshape(9, E, C)
    w_taps = w_taps.astype(compute_dtype)
    b2d = bias.reshape(E, 1).astype(jnp.float32)

    TE = _pick_te(E)
    grid = (B, E // TE)
    # TODO(synk): for very large H*W (and E), add row-blocking with a halo
    # (manual DMA / pl.Element window) so the (TE, L) tile stays within VMEM.

    out_bel = pl.pallas_call(
        patch_embed_kernel,
        out_shape=jax.ShapeDtypeStruct((B, E, L), x_nchw.dtype),
        grid_spec=pltpu.PrefetchScalarGridSpec(
            num_scalar_prefetch=0,
            grid=grid,
            in_specs=[
                pl.BlockSpec((None, C, Lext), lambda b, e: (b, 0, 0)),  # image (1x)
                pl.BlockSpec((9, TE, C), lambda b, e: (0, e, 0)),       # weights
                pl.BlockSpec((TE, 1), lambda b, e: (e, 0)),             # bias
            ],
            out_specs=pl.BlockSpec((None, TE, L), lambda b, e: (b, e, 0)),
        ),
        compiler_params=pltpu.CompilerParams(
            dimension_semantics=("parallel", "parallel")),
    )(x_ext, w_taps, b2d)

    # Drop the padded-border positions and match PyTorch's (B, H*W, E) convention.
    # (Consumers that can take (B, E, H*W) directly save this extra HBM pass.)
    out = out_bel.reshape(B, E, Hp, Wp)[:, :, 1:1 + H, 1:1 + W]
    return jnp.transpose(out.reshape(B, E, H * W), (0, 2, 1))


def reference_patch_embed(x_nchw, weight_oihw, bias):
    # Pure-JAX reference (NCHW conv, same semantics as nn.Conv2d(k=3, padding=1)).
    y = lax.conv_general_dilated(
        x_nchw.astype(jnp.float32), weight_oihw.astype(jnp.float32),
        window_strides=(1, 1), padding=((1, 1), (1, 1)),
        dimension_numbers=("NCHW", "OIHW", "NCHW"))
    y = y + bias[None, :, None, None]
    B, E, H, W = y.shape
    return y.reshape(B, E, H * W).transpose(0, 2, 1)


if __name__ == "__main__":
    # Small shapes consistent with the module: in_chans=4, embed_dim=32.
    B, C, H, W = 2, 4, 16, 16
    E = 32

    key = jax.random.PRNGKey(0)
    kx, kw, kb = jax.random.split(key, 3)
    x = jax.random.normal(kx, (B, C, H, W), dtype=jnp.float32)
    # Deterministic synthetic Conv2d parameters (PyTorch OIHW layout).
    fan_in = C * 3 * 3
    bound = 1.0 / np.sqrt(fan_in)
    weight = jax.random.uniform(kw, (E, C, 3, 3), jnp.float32, -bound, bound)
    bias = jax.random.uniform(kb, (E,), jnp.float32, -bound, bound)

    ref = reference_patch_embed(x, weight, bias)

    # Default path: bf16 streamed operands, f32 accumulation + f32 bias epilogue.
    out = jax.block_until_ready(patch_embed(x, weight, bias))
    assert out.shape == (B, H * W, E)
    np.testing.assert_allclose(np.asarray(out), np.asarray(ref), rtol=3e-2, atol=3e-2)

    # f32 compute path: tight numerics check.
    out_f32 = jax.block_until_ready(
        patch_embed(x, weight, bias, compute_dtype=jnp.float32))
    np.testing.assert_allclose(np.asarray(out_f32), np.asarray(ref),
                               rtol=1e-5, atol=1e-5)

    print("KERNEL_OK")
</pallas_src>

<mosaic_0001>
module attributes {stable_mosaic.version = 11 : i64} {
  func.func @patch_embed_kernel(%arg0: i32, %arg1: i32, %arg2: memref<1x4x362xbf16, #tpu.memory_space<vmem>>, %arg3: memref<9x32x4xbf16, #tpu.memory_space<vmem>>, %arg4: memref<32x1xf32, #tpu.memory_space<vmem>>, %arg5: memref<1x32x324xf32, #tpu.memory_space<vmem>>) attributes {dimension_semantics = [#tpu.dimension_semantics<parallel>, #tpu.dimension_semantics<parallel>], iteration_bounds = array<i64: 2, 1>, scalar_prefetch = 0 : i64, scratch_operands = 0 : i64, tpu.core_type = #tpu.core_type<tc>, window_params = [{transform_indices = @transform_0, window_bounds = array<i64: 1, 4, 362>}, {transform_indices = @transform_1, window_bounds = array<i64: 9, 32, 4>}, {transform_indices = @transform_2, window_bounds = array<i64: 32, 1>}, {transform_indices = @transform_3, window_bounds = array<i64: 1, 32, 324>}]} {
    %cst = arith.constant 0.000000e+00 : f32
    %0 = vector.broadcast %cst : f32 to vector<32x324xf32>
    %c0 = arith.constant 0 : index
    %c0_0 = arith.constant 0 : index
    %c0_1 = arith.constant 0 : index
    %1 = vector.load %arg2[%c0, %c0_0, %c0_1] : memref<1x4x362xbf16, #tpu.memory_space<vmem>>, vector<1x4x324xbf16>
    %2 = vector.shape_cast %1 : vector<1x4x324xbf16> to vector<4x324xbf16>
    %c0_2 = arith.constant 0 : index
    %c0_3 = arith.constant 0 : index
    %c0_4 = arith.constant 0 : index
    %3 = vector.load %arg3[%c0_2, %c0_3, %c0_4] : memref<9x32x4xbf16, #tpu.memory_space<vmem>>, vector<1x32x4xbf16>
    %4 = vector.shape_cast %3 : vector<1x32x4xbf16> to vector<32x4xbf16>
    %cst_5 = arith.constant dense<0.000000e+00> : vector<32x324xf32>
    %5 = tpu.matmul %4, %2, %cst_5 {dimension_numbers = #tpu.dot_dimension_numbers<[1], [0], [0], [1], [0, 0, 1, 1], [], []>} : vector<32x4xbf16>, vector<4x324xbf16>, vector<32x324xf32> -> vector<32x324xf32>
    %6 = arith.addf %0, %5 : vector<32x324xf32>
    %c0_6 = arith.constant 0 : index
    %c0_7 = arith.constant 0 : index
    %c1 = arith.constant 1 : index
    %7 = vector.load %arg2[%c0_6, %c0_7, %c1] : memref<1x4x362xbf16, #tpu.memory_space<vmem>>, vector<1x4x324xbf16>
    %8 = vector.shape_cast %7 : vector<1x4x324xbf16> to vector<4x324xbf16>
    %c1_8 = arith.constant 1 : index
    %c0_9 = arith.constant 0 : index
    %c0_10 = arith.constant 0 : index
    %9 = vector.load %arg3[%c1_8, %c0_9, %c0_10] : memref<9x32x4xbf16, #tpu.memory_space<vmem>>, vector<1x32x4xbf16>
    %10 = vector.shape_cast %9 : vector<1x32x4xbf16> to vector<32x4xbf16>
    %cst_11 = arith.constant dense<0.000000e+00> : vector<32x324xf32>
    %11 = tpu.matmul %10, %8, %cst_11 {dimension_numbers = #tpu.dot_dimension_numbers<[1], [0], [0], [1], [0, 0, 1, 1], [], []>} : vector<32x4xbf16>, vector<4x324xbf16>, vector<32x324xf32> -> vector<32x324xf32>
    %12 = arith.addf %6, %11 : vector<32x324xf32>
    %c0_12 = arith.constant 0 : index
    %c0_13 = arith.constant 0 : index
    %c2 = arith.constant 2 : index
    %13 = vector.load %arg2[%c0_12, %c0_13, %c2] : memref<1x4x362xbf16, #tpu.memory_space<vmem>>, vector<1x4x324xbf16>
    %14 = vector.shape_cast %13 : vector<1x4x324xbf16> to vector<4x324xbf16>
    %c2_14 = arith.constant 2 : index
    %c0_15 = arith.constant 0 : index
    %c0_16 = arith.constant 0 : index
    %15 = vector.load %arg3[%c2_14, %c0_15, %c0_16] : memref<9x32x4xbf16, #tpu.memory_space<vmem>>, vector<1x32x4xbf16>
    %16 = vector.shape_cast %15 : vector<1x32x4xbf16> to vector<32x4xbf16>
    %cst_17 = arith.constant dense<0.000000e+00> : vector<32x324xf32>
    %17 = tpu.matmul %16, %14, %cst_17 {dimension_numbers = #tpu.dot_dimension_numbers<[1], [0], [0], [1], [0, 0, 1, 1], [], []>} : vector<32x4xbf16>, vector<4x324xbf16>, vector<32x324xf32> -> vector<32x324xf32>
    %18 = arith.addf %12, %17 : vector<32x324xf32>
    %c0_18 = arith.constant 0 : index
    %c0_19 = arith.constant 0 : index
    %c18 = arith.constant 18 : index
    %19 = vector.load %arg2[%c0_18, %c0_19, %c18] : memref<1x4x362xbf16, #tpu.memory_space<vmem>>, vector<1x4x324xbf16>
    %20 = vector.shape_cast %19 : vector<1x4x324xbf16> to vector<4x324xbf16>
    %c3 = arith.constant 3 : index
    %c0_20 = arith.constant 0 : index
    %c0_21 = arith.constant 0 : index
    %21 = vector.load %arg3[%c3, %c0_20, %c0_21] : memref<9x32x4xbf16, #tpu.memory_space<vmem>>, vector<1x32x4xbf16>
    %22 = vector.shape_cast %21 : vector<1x32x4xbf16> to vector<32x4xbf16>
    %cst_22 = arith.constant dense<0.000000e+00> : vector<32x324xf32>
    %23 = tpu.matmul %22, %20, %cst_22 {dimension_numbers = #tpu.dot_dimension_numbers<[1], [0], [0], [1], [0, 0, 1, 1], [], []>} : vector<32x4xbf16>, vector<4x324xbf16>, vector<32x324xf32> -> vector<32x324xf32>
    %24 = arith.addf %18, %23 : vector<32x324xf32>
    %c0_23 = arith.constant 0 : index
    %c0_24 = arith.constant 0 : index
    %c19 = arith.constant 19 : index
    %25 = vector.load %arg2[%c0_23, %c0_24, %c19] : memref<1x4x362xbf16, #tpu.memory_space<vmem>>, vector<1x4x324xbf16>
    %26 = vector.shape_cast %25 : vector<1x4x324xbf16> to vector<4x324xbf16>
    %c4 = arith.constant 4 : index
    %c0_25 = arith.constant 0 : index
    %c0_26 = arith.constant 0 : index
    %27 = vector.load %arg3[%c4, %c0_25, %c0_26] : memref<9x32x4xbf16, #tpu.memory_space<vmem>>, vector<1x32x4xbf16>
    %28 = vector.shape_cast %27 : vector<1x32x4xbf16> to vector<32x4xbf16>
    %cst_27 = arith.constant dense<0.000000e+00> : vector<32x324xf32>
    %29 = tpu.matmul %28, %26, %cst_27 {dimension_numbers = #tpu.dot_dimension_numbers<[1], [0], [0], [1], [0, 0, 1, 1], [], []>} : vector<32x4xbf16>, vector<4x324xbf16>, vector<32x324xf32> -> vector<32x324xf32>
    %30 = arith.addf %24, %29 : vector<32x324xf32>
    %c0_28 = arith.constant 0 : index
    %c0_29 = arith.constant 0 : index
    %c20 = arith.constant 20 : index
    %31 = vector.load %arg2[%c0_28, %c0_29, %c20] : memref<1x4x362xbf16, #tpu.memory_space<vmem>>, vector<1x4x324xbf16>
    %32 = vector.shape_cast %31 : vector<1x4x324xbf16> to vector<4x324xbf16>
    %c5 = arith.constant 5 : index
    %c0_30 = arith.constant 0 : index
    %c0_31 = arith.constant 0 : index
    %33 = vector.load %arg3[%c5, %c0_30, %c0_31] : memref<9x32x4xbf16, #tpu.memory_space<vmem>>, vector<1x32x4xbf16>
    %34 = vector.shape_cast %33 : vector<1x32x4xbf16> to vector<32x4xbf16>
    %cst_32 = arith.constant dense<0.000000e+00> : vector<32x324xf32>
    %35 = tpu.matmul %34, %32, %cst_32 {dimension_numbers = #tpu.dot_dimension_numbers<[1], [0], [0], [1], [0, 0, 1, 1], [], []>} : vector<32x4xbf16>, vector<4x324xbf16>, vector<32x324xf32> -> vector<32x324xf32>
    %36 = arith.addf %30, %35 : vector<32x324xf32>
    %c0_33 = arith.constant 0 : index
    %c0_34 = arith.constant 0 : index
    %c36 = arith.constant 36 : index
    %37 = vector.load %arg2[%c0_33, %c0_34, %c36] : memref<1x4x362xbf16, #tpu.memory_space<vmem>>, vector<1x4x324xbf16>
    %38 = vector.shape_cast %37 : vector<1x4x324xbf16> to vector<4x324xbf16>
    %c6 = arith.constant 6 : index
    %c0_35 = arith.constant 0 : index
    %c0_36 = arith.constant 0 : index
    %39 = vector.load %arg3[%c6, %c0_35, %c0_36] : memref<9x32x4xbf16, #tpu.memory_space<vmem>>, vector<1x32x4xbf16>
    %40 = vector.shape_cast %39 : vector<1x32x4xbf16> to vector<32x4xbf16>
    %cst_37 = arith.constant dense<0.000000e+00> : vector<32x324xf32>
    %41 = tpu.matmul %40, %38, %cst_37 {dimension_numbers = #tpu.dot_dimension_numbers<[1], [0], [0], [1], [0, 0, 1, 1], [], []>} : vector<32x4xbf16>, vector<4x324xbf16>, vector<32x324xf32> -> vector<32x324xf32>
    %42 = arith.addf %36, %41 : vector<32x324xf32>
    %c0_38 = arith.constant 0 : index
    %c0_39 = arith.constant 0 : index
    %c37 = arith.constant 37 : index
    %43 = vector.load %arg2[%c0_38, %c0_39, %c37] : memref<1x4x362xbf16, #tpu.memory_space<vmem>>, vector<1x4x324xbf16>
    %44 = vector.shape_cast %43 : vector<1x4x324xbf16> to vector<4x324xbf16>
    %c7 = arith.constant 7 : index
    %c0_40 = arith.constant 0 : index
    %c0_41 = arith.constant 0 : index
    %45 = vector.load %arg3[%c7, %c0_40, %c0_41] : memref<9x32x4xbf16, #tpu.memory_space<vmem>>, vector<1x32x4xbf16>
    %46 = vector.shape_cast %45 : vector<1x32x4xbf16> to vector<32x4xbf16>
    %cst_42 = arith.constant dense<0.000000e+00> : vector<32x324xf32>
    %47 = tpu.matmul %46, %44, %cst_42 {dimension_numbers = #tpu.dot_dimension_numbers<[1], [0], [0], [1], [0, 0, 1, 1], [], []>} : vector<32x4xbf16>, vector<4x324xbf16>, vector<32x324xf32> -> vector<32x324xf32>
    %48 = arith.addf %42, %47 : vector<32x324xf32>
    %c0_43 = arith.constant 0 : index
    %c0_44 = arith.constant 0 : index
    %c38 = arith.constant 38 : index
    %49 = vector.load %arg2[%c0_43, %c0_44, %c38] : memref<1x4x362xbf16, #tpu.memory_space<vmem>>, vector<1x4x324xbf16>
    %50 = vector.shape_cast %49 : vector<1x4x324xbf16> to vector<4x324xbf16>
    %c8 = arith.constant 8 : index
    %c0_45 = arith.constant 0 : index
    %c0_46 = arith.constant 0 : index
    %51 = vector.load %arg3[%c8, %c0_45, %c0_46] : memref<9x32x4xbf16, #tpu.memory_space<vmem>>, vector<1x32x4xbf16>
    %52 = vector.shape_cast %51 : vector<1x32x4xbf16> to vector<32x4xbf16>
    %cst_47 = arith.constant dense<0.000000e+00> : vector<32x324xf32>
    %53 = tpu.matmul %52, %50, %cst_47 {dimension_numbers = #tpu.dot_dimension_numbers<[1], [0], [0], [1], [0, 0, 1, 1], [], []>} : vector<32x4xbf16>, vector<4x324xbf16>, vector<32x324xf32> -> vector<32x324xf32>
    %54 = arith.addf %48, %53 : vector<32x324xf32>
    %c0_48 = arith.constant 0 : index
    %c0_49 = arith.constant 0 : index
    %55 = vector.load %arg4[%c0_48, %c0_49] : memref<32x1xf32, #tpu.memory_space<vmem>>, vector<32x1xf32>
    %56 = vector.broadcast %55 : vector<32x1xf32> to vector<32x324xf32>
    %57 = arith.addf %54, %56 : vector<32x324xf32>
    %c0_50 = arith.constant 0 : index
    %c0_51 = arith.constant 0 : index
    %c0_52 = arith.constant 0 : index
    %58 = vector.load %arg5[%c0_50, %c0_51, %c0_52] : memref<1x32x324xf32, #tpu.memory_space<vmem>>, vector<1x32x324xf32>
    %59 = vector.shape_cast %58 : vector<1x32x324xf32> to vector<32x324xf32>
    %60 = vector.shape_cast %57 : vector<32x324xf32> to vector<1x32x324xf32>
    tpu.vector_store %arg5[%c0_50, %c0_51, %c0_52], %60 {strides = array<i32>} : memref<1x32x324xf32, #tpu.memory_space<vmem>>, vector<1x32x324xf32>,
    return
  }
  func.func @transform_0(%arg0: i32, %arg1: i32) -> (i32, i32, i32) {
    %c0_i32 = arith.constant 0 : i32
    %c0_i32_0 = arith.constant 0 : i32
    %c0_i32_1 = arith.constant 0 : i32
    return %arg0, %c0_i32, %c0_i32_0 : i32, i32, i32
  }
  func.func @transform_1(%arg0: i32, %arg1: i32) -> (i32, i32, i32) {
    %c0_i32 = arith.constant 0 : i32
    %c0_i32_0 = arith.constant 0 : i32
    %c0_i32_1 = arith.constant 0 : i32
    return %c0_i32, %arg1, %c0_i32_0 : i32, i32, i32
  }
  func.func @transform_2(%arg0: i32, %arg1: i32) -> (i32, i32) {
    %c0_i32 = arith.constant 0 : i32
    %c0_i32_0 = arith.constant 0 : i32
    return %arg1, %c0_i32 : i32, i32
  }
  func.func @transform_3(%arg0: i32, %arg1: i32) -> (i32, i32, i32) {
    %c0_i32 = arith.constant 0 : i32
    %c0_i32_0 = arith.constant 0 : i32
    return %arg0, %arg1, %c0_i32 : i32, i32, i32
  }
}

</mosaic_0001>

<llo_original>
// kernel: tpu_custom_call.1
$region0: #{tpu_custom_call.1}
  #allocation0 [shape = 'u32[]', space=smem, size = 0x4, offset = 0x4, fixed_abs, tag = 'smem constant byte address 0x4 - core index']
  #allocation1 [shape = 'u32[144,128]{1,0:T(1,128)}', space=vmem, size = 0x12000, scoped, tag = 'internal scratch']
  %s0 = inlined_call_operand.vmem [shape: bf16[2,4,362], index: 0, kind: input, shape index: {}]
  %s1 = inlined_call_operand.vmem [shape: bf16[9,32,4], index: 1, kind: input, shape index: {}]
  %s2 = inlined_call_operand.vmem [shape: f32[32,1], index: 2, kind: input, shape index: {}]
  %s3 = inlined_call_operand.hbm [shape: f32[2,32,324], index: 3, kind: output, shape index: {}]
  %s4 = sld [smem:[#allocation0]]
  $region45: #{tpu_custom_call.1} parent=0
    _
  %s6 = ssub.s32 1, %s4
  %s7 = scalar_select 0, %s6, %s4
  $region1: #{tpu_custom_call.1} parent=0
    #allocation2 [shape = 'u8[98304]{0}', space=vmem, size = 0x18000, scoped, tag = 'output window, operand 0']
    #allocation3 [shape = 's32[2]{0}', space=sflag, size = 0x8, scoped, tag = 'scoped memory for tpu_custom_call.1']
    %8 = vsyncpa [#allocation3], 0
    %s9 = scalar_lea.sflag [#allocation3], 1
    %10 = vsyncpa %s9, 0
    loop: start=0, step=1, limit=4
    $region2: #{tpu_custom_call.1} parent=1 // loop_pre_header
      _
    $region3: #{tpu_custom_call.1} parent=1 // loop_header
      %s12 = sphi 0, %s16
      %p13 = scmp.ge.s32.totalorder %s12, 4
      %s19 = sphi 0, %s31
      %s20 = sphi 0, %s27
      %s21 = sphi 0, %s19
      %s22 = sphi 0, %s20
      %s23 = sphi 0, %s21
      %s24 = sphi 0, %s22
      %s34 = sphi 0, %s36
      %s37 = sphi 0, %s34
      %s38 = sphi 0, %s37
      %s54 = sphi 0, %s38
      %s60 = sphi 0, %s62
      %s63 = sphi 0, %s60
      %s64 = sphi 0, %s63
      %s80 = sphi 0, %s64
      %s86 = sphi 0, %s88
      %s89 = sphi 0, %s86
      %s90 = sphi 0, %s89
      %s106 = sphi 0, %s90
      %s114 = sphi 0, %s116
      %s117 = sphi 0, %s114
      %s118 = sphi 0, %s117
      %s134 = sphi 0, %s118
    $region4: #{tpu_custom_call.1} parent=1 // loop_header_branch
      %15 = sbr.rel (%p13) target = $region8
    $region5: #{tpu_custom_call.1} parent=1 // loop_body
      %s17 = ssub.s32 %s12, 1
      %s18 = ssub.s32 %s12, 2
      %s25 = sadd.s32 1, %s20
      %p26 = scmp.ge.s32.totalorder %s25, 1
      %s27 = scalar_select %p26, 0, %s25
      %s28 = sadd.s32 1, %s19
      %s29 = scalar_select %p26, %s28, %s19
      %p30 = scmp.ge.s32.totalorder %s29, 2
      %s31 = scalar_select %p30, 0, %s29
      %s32 = ssub.s32 %s19, %s31
      %p33 = scmp.eq.s32.totalorder %s32, 0
      %s35 = sadd.s32 %s34, 1
      %s36 = scalar_select %p33, %s34, %s35
      %p39 = pneg %p33
      %p40 = scmp.eq.s32.totalorder %s12, 1
      %p41 = por %p39, %p40
      %p42 = scmp.ne.s32.totalorder %s34, %s37
      %p43 = scmp.eq.s32.totalorder %s12, 0
      %p44 = por %p42, %p43
      %p45 = scmp.ne.s32.totalorder %s34, %s37
      %p46 = scmp.eq.s32.totalorder %s17, 1
      %p47 = por %p45, %p46
      %p48 = scmp.ne.s32.totalorder %s37, %s38
      %p49 = scmp.eq.s32.totalorder %s17, 0
      %p50 = por %p48, %p49
      %p51 = scmp.ne.s32.totalorder %s37, %s38
      %p52 = scmp.eq.s32.totalorder %s18, 1
      %p53 = por %p51, %p52
      %p55 = scmp.ne.s32.totalorder %s38, %s54
      %p56 = scmp.eq.s32.totalorder %s18, 0
      %p57 = por %p55, %p56
      %s58 = ssub.s32 %s20, %s27
      %p59 = scmp.eq.s32.totalorder %s58, 0
      %s61 = sadd.s32 %s60, 1
      %s62 = scalar_select %p59, %s60, %s61
      %p65 = pneg %p59
      %p66 = scmp.eq.s32.totalorder %s12, 1
      %p67 = por %p65, %p66
      %p68 = scmp.ne.s32.totalorder %s60, %s63
      %p69 = scmp.eq.s32.totalorder %s12, 0
      %p70 = por %p68, %p69
      %p71 = scmp.ne.s32.totalorder %s60, %s63
      %p72 = scmp.eq.s32.totalorder %s17, 1
      %p73 = por %p71, %p72
      %p74 = scmp.ne.s32.totalorder %s63, %s64
      %p75 = scmp.eq.s32.totalorder %s17, 0
      %p76 = por %p74, %p75
      %p77 = scmp.ne.s32.totalorder %s63, %s64
      %p78 = scmp.eq.s32.totalorder %s18, 1
      %p79 = por %p77, %p78
      %p81 = scmp.ne.s32.totalorder %s64, %s80
      %p82 = scmp.eq.s32.totalorder %s18, 0
      %p83 = por %p81, %p82
      %s84 = ssub.s32 %s20, %s27
      %p85 = scmp.eq.s32.totalorder %s84, 0
      %s87 = sadd.s32 %s86, 1
      %s88 = scalar_select %p85, %s86, %s87
      %p91 = pneg %p85
      %p92 = scmp.eq.s32.totalorder %s12, 1
      %p93 = por %p91, %p92
      %p94 = scmp.ne.s32.totalorder %s86, %s89
      %p95 = scmp.eq.s32.totalorder %s12, 0
      %p96 = por %p94, %p95
      %p97 = scmp.ne.s32.totalorder %s86, %s89
      %p98 = scmp.eq.s32.totalorder %s17, 1
      %p99 = por %p97, %p98
      %p100 = scmp.ne.s32.totalorder %s89, %s90
      %p101 = scmp.eq.s32.totalorder %s17, 0
      %p102 = por %p100, %p101
      %p103 = scmp.ne.s32.totalorder %s89, %s90
      %p104 = scmp.eq.s32.totalorder %s18, 1
      %p105 = por %p103, %p104
      %p107 = scmp.ne.s32.totalorder %s90, %s106
      %p108 = scmp.eq.s32.totalorder %s18, 0
      %p109 = por %p107, %p108
      %s110 = ssub.s32 %s19, %s31
      %s111 = ssub.s32 %s20, %s27
      %s112 = sor.u32 %s110, %s111
      %p113 = scmp.eq.s32.totalorder %s112, 0
      %s115 = sadd.s32 %s114, 1
      %s116 = scalar_select %p113, %s114, %s115
      %p119 = pneg %p113
      %p120 = scmp.eq.s32.totalorder %s12, 1
      %p121 = por %p119, %p120
      %p122 = scmp.ne.s32.totalorder %s114, %s117
      %p123 = scmp.eq.s32.totalorder %s12, 0
      %p124 = por %p122, %p123
      %p125 = scmp.ne.s32.totalorder %s114, %s117
      %p126 = scmp.eq.s32.totalorder %s17, 1
      %p127 = por %p125, %p126
      %p128 = scmp.ne.s32.totalorder %s117, %s118
      %p129 = scmp.eq.s32.totalorder %s17, 0
      %p130 = por %p128, %p129
      %p131 = scmp.ne.s32.totalorder %s117, %s118
      %p132 = scmp.eq.s32.totalorder %s18, 1
      %p133 = por %p131, %p132
      %p135 = scmp.ne.s32.totalorder %s118, %s134
      %p136 = scmp.eq.s32.totalorder %s18, 0
      %p137 = por %p135, %p136
      %p138 = scmp.le.s32.totalorder 1, %s12
      %p139 = scmp.lt.s32.totalorder %s12, 3
      %p140 = pnand %p138, %p139
      %p141 = pneg %p140
      // Predicated region
      $region9: #{tpu_custom_call.1} parent=5 // pred_check
        _
      $region10: #{tpu_custom_call.1} parent=5 // pred_check_branch
        %143 = sbr.rel (%p140) target = $region12
      $region11: #{tpu_custom_call.1} parent=5 // pred_region
        %s144 = ssub.s32 %s12, 1
        // Predicated region
        $region13: #{tpu_custom_call.1} parent=11 // pred_check
          %p145 = pneg %p76
        $region14: #{tpu_custom_call.1} parent=11 // pred_check_branch
          %147 = sbr.rel (%p145) target = $region16
        $region15: #{tpu_custom_call.1} parent=11 // pred_region
          %s148 = smul.u32 4, %s22
          %p149 = scmp.lt.s32.totalorder %s148, 3
          %s150 = scalar_select %p149, %s148, 3
          %s151 = smul.addr %s150, 4
          %s152 = scalar_lea.vmem %s1, %s151
          %s153 = smul.u32 4, %s22
        $region16: #{tpu_custom_call.1} parent=11 // pred_fallthru
          _
        // Predicated region
        $region17: #{tpu_custom_call.1} parent=11 // pred_check
          %p154 = pneg %p102
        $region18: #{tpu_custom_call.1} parent=11 // pred_check_branch
          %156 = sbr.rel (%p154) target = $region20
        $region19: #{tpu_custom_call.1} parent=11 // pred_region
          %s157 = smul.u32 4, %s22
          %p158 = scmp.lt.s32.totalorder %s157, 3
          %s159 = scalar_select %p158, %s157, 3
          %s160 = smul.addr %s159, 8
          %s161 = scalar_lea.vmem %s2, %s160
          %s162 = smul.u32 4, %s22
        $region20: #{tpu_custom_call.1} parent=11 // pred_fallthru
          _
      $region12: #{tpu_custom_call.1} parent=5 // pred_fallthru
        _
      %p163 = scmp.lt.s32.totalorder %s12, 2
      // Predicated region
      $region21: #{tpu_custom_call.1} parent=5 // pred_check
        %p164 = pneg %p163
      $region22: #{tpu_custom_call.1} parent=5 // pred_check_branch
        %166 = sbr.rel (%p164) target = $region24
      $region23: #{tpu_custom_call.1} parent=5 // pred_region
        // Predicated region
        $region25: #{tpu_custom_call.1} parent=23 // pred_check
          %p167 = pneg %p44
        $region26: #{tpu_custom_call.1} parent=23 // pred_check_branch
          %169 = sbr.rel (%p167) target = $region28
        $region27: #{tpu_custom_call.1} parent=23 // pred_region
          %p170 = scmp.lt.s32.totalorder %s19, 1
          %s171 = scalar_select %p170, %s19, 1
          %s172 = smul.addr %s171, 3
          %s173 = smul.addr %s172, 2
          %s174 = scalar_lea.vmem %s0, %s173
        $region28: #{tpu_custom_call.1} parent=23 // pred_fallthru
          _
      $region24: #{tpu_custom_call.1} parent=5 // pred_fallthru
        _
      %p175 = scmp.le.s32.totalorder 1, %s12
      %p176 = scmp.lt.s32.totalorder %s12, 3
      %p177 = pnand %p175, %p176
      %p178 = pneg %p177
      // Predicated region
      $region29: #{tpu_custom_call.1} parent=5 // pred_check
        _
      $region30: #{tpu_custom_call.1} parent=5 // pred_check_branch
        %180 = sbr.rel (%p177) target = $region32
      $region31: #{tpu_custom_call.1} parent=5 // pred_region
        %s181 = ssub.s32 %s12, 1
        %p182 = scmp.lt.s32.totalorder %s21, 1
        %s183 = scalar_select %p182, %s21, 1
        %s184 = smul.addr %s183, 3
        %s185 = smul.addr %s184, 2
        %s186 = scalar_lea.vmem %s0, %s185
        %p187 = pneg %p50
        %p188 = pneg %p47
        %s189 = smul.u32 4, %s22
        %p190 = scmp.lt.s32.totalorder %s189, 3
        %s191 = scalar_select %p190, %s189, 3
        %s192 = smul.addr %s191, 4
        %s193 = scalar_lea.vmem %s1, %s192
        %p194 = pneg %p76
        %p195 = pneg %p73
        %s196 = smul.u32 4, %s22
        %p197 = scmp.lt.s32.totalorder %s196, 3
        %s198 = scalar_select %p197, %s196, 3
        %s199 = smul.addr %s198, 8
        %s200 = scalar_lea.vmem %s2, %s199
        %p201 = pneg %p102
        %p202 = pneg %p99
        %p203 = pneg %p130
        %p204 = pneg %p127
        %s205 = sand.u32 %s117, 1
        %s206 = scalar_lea.sflag [#allocation3], %s205
        %s207 = sand.u32 %s117, 1
        %s208 = smul.addr %s207, 96
        %s209 = scalar_lea.vmem [#allocation2], %s208
        %p210 = scmp.lt.s32.totalorder %s21, 1
        %s211 = scalar_select %p210, %s21, 1
        %s212 = smul.addr %s211, 3
        %s213 = smul.addr %s212, 2
        %s214 = scalar_lea.vmem %s0, %s213
        %s215 = smul.u32 4, %s22
        %p216 = scmp.lt.s32.totalorder %s215, 3
        %s217 = scalar_select %p216, %s215, 3
        %s218 = smul.addr %s217, 4
        %s219 = scalar_lea.vmem %s1, %s218
        %s220 = smul.u32 4, %s22
        %s221 = smul.u32 4, %s22
        %p222 = scmp.lt.s32.totalorder %s221, 3
        %s223 = scalar_select %p222, %s221, 3
        %s224 = smul.addr %s223, 8
        %s225 = scalar_lea.vmem %s2, %s224
        %s226 = smul.u32 4, %s22
        %s227 = smul.u32 4, %s22
        %v229 = vld [vmem:[%s214] sm:$0x3f]
        %v230 = vld [vmem:[%s219] sm:$0xf]
        %v231 = vld [vmem:[%s219 + $0x4] sm:$0xf]
        %v232 = vld [vmem:[%s219 + $0x8] sm:$0xf]
        %v233 = vld [vmem:[%s219 + $0xc] sm:$0xf]
        %s234 = scalar_lea.vmem %s219, 16
        %v235 = vld [vmem:[%s234] sm:$0xf]
        %v236 = vld [vmem:[%s234 + $0x4] sm:$0xf]
        %v237 = vld [vmem:[%s234 + $0x8] sm:$0xf]
        %v238 = vld [vmem:[%s234 + $0xc] sm:$0xf]
        %v243 = vunpack.c.l.b16 %v235
        %v244 = vunpack.c.l.b16 %v236
        %v245 = vunpack.c.l.b16 %v237
        %v246 = vunpack.c.l.b16 %v238
        %v247 = vpack.c.b16 %v244, %v243
        %v248 = vpack.c.b16 %v246, %v245
        %v250 = vcombine.high %v229, %v229
        %v252 = vunpack.c.l.s4 1983009808
        %v253 = vunpack.c.0.s8 %v252
        %v254 = vlaneseq
        %v255 = vshrl.u32 %v254, 7
        %v256 = vsub.s32 %v253, %v255
        %v257 = vrot.slane %v229, %v256
        %v259 = vunpack.c.l.s4 1983009808
        %v260 = vunpack.c.0.s8 %v259
        %v261 = vlaneseq
        %v262 = vshrl.u32 %v261, 7
        %v263 = vsub.s32 %v260, %v262
        %v264 = vrot.slane %v250, %v263
        %v265 = vcombine.high %v257, %v257
        %266 = vrot.lane.b32.xlu0 %v257, 127
        %v267 = vpop.permute.xlu0 %266
        %268 = vrot.lane.b32.xlu0 %v265, 127
        %v269 = vpop.permute.xlu0 %268
        %270 = vrot.lane.b32.xlu0 %v264, 127
        %v271 = vpop.permute.xlu0 %270
        %vm272 = vcmask 1039360
        %v273 = vsel %vm272, %v267, %v269
        %v274 = vsel %vm272, %v269, %v271
        %vm275 = vcmask 31744
        %v277 = vsel %vm275, %v247, 0
        %v280 = vsel %vm275, %v248, 0
        %vm282 = vcmask 1041408
        %v284 = vsel %vm282, %v273, 0
        %v287 = vsel %vm282, %v274, 0
        %v290 = vsel %vm282, %v271, 0
        %292 = vmatprep.subr.bf16.mxu0 0
        %293 = vmatpush1.bf16.msra.mxu0 0
        %294 = vmatprep.subr.bf16.mxu0 0
        %295 = vmatpush1.bf16.msra.mxu0 0
        %296 = vmatprep.subr.bf16.mxu0 0
        %297 = vmatpush1.bf16.msra.mxu0 0
        %298 = vmatprep.subr.bf16.mxu0 0
        %299 = vmatpush1.bf16.msra.mxu0 0
        %300 = vmatprep.subr.bf16.mxu0 0
        %301 = vmatpush1.bf16.msra.mxu0 0
        %302 = vmatprep.subr.bf16.mxu0 0
        %303 = vmatpush1.bf16.msra.mxu0 0
        %304 = vmatprep.subr.bf16.mxu0 0
        %305 = vmatpush1.bf16.msra.mxu0 0
        %306 = vmatprep.subr.bf16.mxu0 %v287
        %307 = vmatpush1.bf16.msra.mxu0 %v284
        %308 = vmatprep.subr.bf16.mxu0 0
        %309 = vmatpush2.bf16.msra.mxu0 0
        %310 = vmatprep.subr.bf16.mxu0 0
        %311 = vmatpush2.bf16.msra.mxu0 0
        %312 = vmatprep.subr.bf16.mxu0 0
        %313 = vmatpush2.bf16.msra.mxu0 0
        %314 = vmatprep.subr.bf16.mxu0 0
        %315 = vmatpush2.bf16.msra.mxu0 0
        %316 = vmatprep.subr.bf16.mxu0 0
        %317 = vmatpush2.bf16.msra.mxu0 0
        %318 = vmatprep.subr.bf16.mxu0 0
        %319 = vmatpush2.bf16.msra.mxu0 0
        %320 = vmatprep.subr.bf16.mxu0 0
        %321 = vmatpush2.bf16.msra.mxu0 0
        %322 = vmatprep.subr.bf16.mxu0 0
        %323 = vmatpush2.bf16.msra.mxu0 0
        %324 = vmatprep.mubr.bf16.mxu0 0
        %325 = vmatmul.mubr.bf16.gmra.mxu0 %v277
        %v326 = vpop.f32.mrf.mxu0
        %v327 = vadd.f32 0.0, %v326
        %v328 = vpop.f32.mrf.mxu0
        %v329 = vadd.f32 0.0, %v328
        %v330 = vpop.f32.mrf.mxu0
        %v331 = vadd.f32 0.0, %v330
        %v332 = vpop.f32.mrf.mxu0
        %v333 = vadd.f32 0.0, %v332
        %334 = vmatprep.mubr.bf16.mxu0 0
        %335 = vmatmul.mubr.bf16.gmra.mxu0 %v280
        %v336 = vpop.f32.mrf.mxu0
        %v337 = vadd.f32 0.0, %v336
        %v338 = vpop.f32.mrf.mxu0
        %v339 = vadd.f32 0.0, %v338
        %v340 = vpop.f32.mrf.mxu0
        %v341 = vadd.f32 0.0, %v340
        %v342 = vpop.f32.mrf.mxu0
        %v343 = vadd.f32 0.0, %v342
        %344 = vdwg.mxu0
        %345 = vmatprep.subr.bf16.mxu0 0
        %346 = vmatpush1.bf16.msra.mxu0 0
        %347 = vmatprep.subr.bf16.mxu0 0
        %348 = vmatpush1.bf16.msra.mxu0 0
        %349 = vmatprep.subr.bf16.mxu0 0
        %350 = vmatpush1.bf16.msra.mxu0 0
        %351 = vmatprep.subr.bf16.mxu0 0
        %352 = vmatpush1.bf16.msra.mxu0 0
        %353 = vmatprep.subr.bf16.mxu0 0
        %354 = vmatpush1.bf16.msra.mxu0 0
        %355 = vmatprep.subr.bf16.mxu0 0
        %356 = vmatpush1.bf16.msra.mxu0 0
        %357 = vmatprep.subr.bf16.mxu0 0
        %358 = vmatpush1.bf16.msra.mxu0 0
        %359 = vmatprep.subr.bf16.mxu0 0
        %360 = vmatpush1.bf16.msra.mxu0 %v290
        %361 = vmatprep.subr.bf16.mxu0 0
        %362 = vmatpush2.bf16.msra.mxu0 0
        %363 = vmatprep.subr.bf16.mxu0 0
        %364 = vmatpush2.bf16.msra.mxu0 0
        %365 = vmatprep.subr.bf16.mxu0 0
        %366 = vmatpush2.bf16.msra.mxu0 0
        %367 = vmatprep.subr.bf16.mxu0 0
        %368 = vmatpush2.bf16.msra.mxu0 0
        %369 = vmatprep.subr.bf16.mxu0 0
        %370 = vmatpush2.bf16.msra.mxu0 0
        %371 = vmatprep.subr.bf16.mxu0 0
        %372 = vmatpush2.bf16.msra.mxu0 0
        %373 = vmatprep.subr.bf16.mxu0 0
        %374 = vmatpush2.bf16.msra.mxu0 0
        %375 = vmatprep.subr.bf16.mxu0 0
        %376 = vmatpush2.bf16.msra.mxu0 0
        %377 = vmatprep.mubr.bf16.mxu0 0
        %378 = vmatmul.mubr.bf16.gmra.mxu0 %v277
        %v379 = vpop.f32.mrf.mxu0
        %v380 = vadd.f32 0.0, %v379
        %v381 = vpop.f32.mrf.mxu0
        %v382 = vpop.f32.mrf.mxu0
        %v383 = vadd.f32 0.0, %v382
        %v384 = vpop.f32.mrf.mxu0
        %385 = vmatprep.mubr.bf16.mxu0 0
        %386 = vmatmul.mubr.bf16.gmra.mxu0 %v280
        %v387 = vpop.f32.mrf.mxu0
        %v388 = vadd.f32 0.0, %v387
        %v389 = vpop.f32.mrf.mxu0
        %v390 = vpop.f32.mrf.mxu0
        %v391 = vadd.f32 0.0, %v390
        %v392 = vpop.f32.mrf.mxu0
        %393 = vdwg.mxu0
        %v398 = vunpack.c.l.b16 %v230
        %v399 = vunpack.c.l.b16 %v231
        %v400 = vunpack.c.l.b16 %v232
        %v401 = vunpack.c.l.b16 %v233
        %v402 = vpack.c.b16 %v399, %v398
        %v403 = vpack.c.b16 %v401, %v400
        %v405 = vsel %vm275, %v402, 0
        %v408 = vsel %vm275, %v403, 0
        %v411 = vsel %vm282, %v257, 0
        %v414 = vsel %vm282, %v265, 0
        %v417 = vsel %vm282, %v264, 0
        %419 = vmatprep.subr.bf16.mxu0 0
        %420 = vmatpush1.bf16.msra.mxu0 0
        %421 = vmatprep.subr.bf16.mxu0 0
        %422 = vmatpush1.bf16.msra.mxu0 0
        %423 = vmatprep.subr.bf16.mxu0 0
        %424 = vmatpush1.bf16.msra.mxu0 0
        %425 = vmatprep.subr.bf16.mxu0 0
        %426 = vmatpush1.bf16.msra.mxu0 0
        %427 = vmatprep.subr.bf16.mxu0 0
        %428 = vmatpush1.bf16.msra.mxu0 0
        %429 = vmatprep.subr.bf16.mxu0 0
        %430 = vmatpush1.bf16.msra.mxu0 0
        %431 = vmatprep.subr.bf16.mxu0 0
        %432 = vmatpush1.bf16.msra.mxu0 0
        %433 = vmatprep.subr.bf16.mxu0 %v414
        %434 = vmatpush1.bf16.msra.mxu0 %v411
        %435 = vmatprep.subr.bf16.mxu0 0
        %436 = vmatpush2.bf16.msra.mxu0 0
        %437 = vmatprep.subr.bf16.mxu0 0
        %438 = vmatpush2.bf16.msra.mxu0 0
        %439 = vmatprep.subr.bf16.mxu0 0
        %440 = vmatpush2.bf16.msra.mxu0 0
        %441 = vmatprep.subr.bf16.mxu0 0
        %442 = vmatpush2.bf16.msra.mxu0 0
        %443 = vmatprep.subr.bf16.mxu0 0
        %444 = vmatpush2.bf16.msra.mxu0 0
        %445 = vmatprep.subr.bf16.mxu0 0
        %446 = vmatpush2.bf16.msra.mxu0 0
        %447 = vmatprep.subr.bf16.mxu0 0
        %448 = vmatpush2.bf16.msra.mxu0 0
        %449 = vmatprep.subr.bf16.mxu0 0
        %450 = vmatpush2.bf16.msra.mxu0 0
        %451 = vmatprep.mubr.bf16.mxu0 0
        %452 = vmatmul.mubr.bf16.gmra.mxu0 %v405
        %v453 = vpop.f32.mrf.mxu0
        %v454 = vadd.f32 %v327, %v453
        %v455 = vpop.f32.mrf.mxu0
        %v456 = vadd.f32 %v329, %v455
        %v457 = vpop.f32.mrf.mxu0
        %v458 = vadd.f32 %v331, %v457
        %v459 = vpop.f32.mrf.mxu0
        %v460 = vadd.f32 %v333, %v459
        %461 = vmatprep.mubr.bf16.mxu0 0
        %462 = vmatmul.mubr.bf16.gmra.mxu0 %v408
        %v463 = vpop.f32.mrf.mxu0
        %v464 = vadd.f32 %v337, %v463
        %v465 = vpop.f32.mrf.mxu0
        %v466 = vadd.f32 %v339, %v465
        %v467 = vpop.f32.mrf.mxu0
        %v468 = vadd.f32 %v341, %v467
        %v469 = vpop.f32.mrf.mxu0
        %v470 = vadd.f32 %v343, %v469
        %471 = vdwg.mxu0
        %472 = vmatprep.subr.bf16.mxu0 0
        %473 = vmatpush1.bf16.msra.mxu0 0
        %474 = vmatprep.subr.bf16.mxu0 0
        %475 = vmatpush1.bf16.msra.mxu0 0
        %476 = vmatprep.subr.bf16.mxu0 0
        %477 = vmatpush1.bf16.msra.mxu0 0
        %478 = vmatprep.subr.bf16.mxu0 0
        %479 = vmatpush1.bf16.msra.mxu0 0
        %480 = vmatprep.subr.bf16.mxu0 0
        %481 = vmatpush1.bf16.msra.mxu0 0
        %482 = vmatprep.subr.bf16.mxu0 0
        %483 = vmatpush1.bf16.msra.mxu0 0
        %484 = vmatprep.subr.bf16.mxu0 0
        %485 = vmatpush1.bf16.msra.mxu0 0
        %486 = vmatprep.subr.bf16.mxu0 0
        %487 = vmatpush1.bf16.msra.mxu0 %v417
        %488 = vmatprep.subr.bf16.mxu0 0
        %489 = vmatpush2.bf16.msra.mxu0 0
        %490 = vmatprep.subr.bf16.mxu0 0
        %491 = vmatpush2.bf16.msra.mxu0 0
        %492 = vmatprep.subr.bf16.mxu0 0
        %493 = vmatpush2.bf16.msra.mxu0 0
        %494 = vmatprep.subr.bf16.mxu0 0
        %495 = vmatpush2.bf16.msra.mxu0 0
        %496 = vmatprep.subr.bf16.mxu0 0
        %497 = vmatpush2.bf16.msra.mxu0 0
        %498 = vmatprep.subr.bf16.mxu0 0
        %499 = vmatpush2.bf16.msra.mxu0 0
        %500 = vmatprep.subr.bf16.mxu0 0
        %501 = vmatpush2.bf16.msra.mxu0 0
        %502 = vmatprep.subr.bf16.mxu0 0
        %503 = vmatpush2.bf16.msra.mxu0 0
        %504 = vmatprep.mubr.bf16.mxu0 0
        %505 = vmatmul.mubr.bf16.gmra.mxu0 %v405
        %v506 = vpop.f32.mrf.mxu0
        %v507 = vadd.f32 %v380, %v506
        %v508 = vpop.f32.mrf.mxu0
        %v509 = vpop.f32.mrf.mxu0
        %v510 = vadd.f32 %v383, %v509
        %v511 = vpop.f32.mrf.mxu0
        %512 = vmatprep.mubr.bf16.mxu0 0
        %513 = vmatmul.mubr.bf16.gmra.mxu0 %v408
        %v514 = vpop.f32.mrf.mxu0
        %v515 = vadd.f32 %v388, %v514
        %v516 = vpop.f32.mrf.mxu0
        %v517 = vpop.f32.mrf.mxu0
        %v518 = vadd.f32 %v391, %v517
        %v519 = vpop.f32.mrf.mxu0
        %520 = vdwg.mxu0
        %v521 = vld [vmem:[%s214] sm:$0x3f]
        %s522 = scalar_lea.vmem %s219, 32
        %v523 = vld [vmem:[%s522] sm:$0xf]
        %v524 = vld [vmem:[%s522 + $0x4] sm:$0xf]
        %v525 = vld [vmem:[%s522 + $0x8] sm:$0xf]
        %v526 = vld [vmem:[%s522 + $0xc] sm:$0xf]
        %v531 = vunpack.c.l.b16 %v523
        %v532 = vunpack.c.l.b16 %v524
        %v533 = vunpack.c.l.b16 %v525
        %v534 = vunpack.c.l.b16 %v526
        %v535 = vpack.c.b16 %v532, %v531
        %v536 = vpack.c.b16 %v534, %v533
        %v538 = vcombine.high %v521, %v521
        %v540 = vunpack.c.l.s4 1983009808
        %v541 = vunpack.c.0.s8 %v540
        %v542 = vlaneseq
        %v543 = vshrl.u32 %v542, 7
        %v544 = vsub.s32 %v541, %v543
        %v545 = vrot.slane %v521, %v544
        %v547 = vunpack.c.l.s4 1983009808
        %v548 = vunpack.c.0.s8 %v547
        %v549 = vlaneseq
        %v550 = vshrl.u32 %v549, 7
        %v551 = vsub.s32 %v548, %v550
        %v552 = vrot.slane %v538, %v551
        %v553 = vcombine.high %v545, %v545
        %554 = vrot.lane.b32.xlu0 %v545, 126
        %v555 = vpop.permute.xlu0 %554
        %556 = vrot.lane.b32.xlu0 %v553, 126
        %v557 = vpop.permute.xlu0 %556
        %558 = vrot.lane.b32.xlu0 %v552, 126
        %v559 = vpop.permute.xlu0 %558
        %vm560 = vcmask 1031168
        %v561 = vsel %vm560, %v555, %v557
        %v562 = vsel %vm560, %v557, %v559
        %v564 = vsel %vm275, %v535, 0
        %v567 = vsel %vm275, %v536, 0
        %v570 = vsel %vm282, %v561, 0
        %v573 = vsel %vm282, %v562, 0
        %v576 = vsel %vm282, %v559, 0
        %578 = vmatprep.subr.bf16.mxu0 0
        %579 = vmatpush1.bf16.msra.mxu0 0
        %580 = vmatprep.subr.bf16.mxu0 0
        %581 = vmatpush1.bf16.msra.mxu0 0
        %582 = vmatprep.subr.bf16.mxu0 0
        %583 = vmatpush1.bf16.msra.mxu0 0
        %584 = vmatprep.subr.bf16.mxu0 0
        %585 = vmatpush1.bf16.msra.mxu0 0
        %586 = vmatprep.subr.bf16.mxu0 0
        %587 = vmatpush1.bf16.msra.mxu0 0
        %588 = vmatprep.subr.bf16.mxu0 0
        %589 = vmatpush1.bf16.msra.mxu0 0
        %590 = vmatprep.subr.bf16.mxu0 0
        %591 = vmatpush1.bf16.msra.mxu0 0
        %592 = vmatprep.subr.bf16.mxu0 %v573
        %593 = vmatpush1.bf16.msra.mxu0 %v570
        %594 = vmatprep.subr.bf16.mxu0 0
        %595 = vmatpush2.bf16.msra.mxu0 0
        %596 = vmatprep.subr.bf16.mxu0 0
        %597 = vmatpush2.bf16.msra.mxu0 0
        %598 = vmatprep.subr.bf16.mxu0 0
        %599 = vmatpush2.bf16.msra.mxu0 0
        %600 = vmatprep.subr.bf16.mxu0 0
        %601 = vmatpush2.bf16.msra.mxu0 0
        %602 = vmatprep.subr.bf16.mxu0 0
        %603 = vmatpush2.bf16.msra.mxu0 0
        %604 = vmatprep.subr.bf16.mxu0 0
        %605 = vmatpush2.bf16.msra.mxu0 0
        %606 = vmatprep.subr.bf16.mxu0 0
        %607 = vmatpush2.bf16.msra.mxu0 0
        %608 = vmatprep.subr.bf16.mxu0 0
        %609 = vmatpush2.bf16.msra.mxu0 0
        %610 = vmatprep.mubr.bf16.mxu0 0
        %611 = vmatmul.mubr.bf16.gmra.mxu0 %v564
        %v612 = vpop.f32.mrf.mxu0
        %v613 = vadd.f32 0.0, %v612
        %v614 = vpop.f32.mrf.mxu0
        %v615 = vadd.f32 0.0, %v614
        %v616 = vpop.f32.mrf.mxu0
        %v617 = vadd.f32 0.0, %v616
        %v618 = vpop.f32.mrf.mxu0
        %v619 = vadd.f32 0.0, %v618
        %620 = vmatprep.mubr.bf16.mxu0 0
        %621 = vmatmul.mubr.bf16.gmra.mxu0 %v567
        %v622 = vpop.f32.mrf.mxu0
        %v623 = vadd.f32 0.0, %v622
        %v624 = vpop.f32.mrf.mxu0
        %v625 = vadd.f32 0.0, %v624
        %v626 = vpop.f32.mrf.mxu0
        %v627 = vadd.f32 0.0, %v626
        %v628 = vpop.f32.mrf.mxu0
        %v629 = vadd.f32 0.0, %v628
        %630 = vdwg.mxu0
        %631 = vmatprep.subr.bf16.mxu0 0
        %632 = vmatpush1.bf16.msra.mxu0 0
        %633 = vmatprep.subr.bf16.mxu0 0
        %634 = vmatpush1.bf16.msra.mxu0 0
        %635 = vmatprep.subr.bf16.mxu0 0
        %636 = vmatpush1.bf16.msra.mxu0 0
        %637 = vmatprep.subr.bf16.mxu0 0
        %638 = vmatpush1.bf16.msra.mxu0 0
        %639 = vmatprep.subr.bf16.mxu0 0
        %640 = vmatpush1.bf16.msra.mxu0 0
        %641 = vmatprep.subr.bf16.mxu0 0
        %642 = vmatpush1.bf16.msra.mxu0 0
        %643 = vmatprep.subr.bf16.mxu0 0
        %644 = vmatpush1.bf16.msra.mxu0 0
        %645 = vmatprep.subr.bf16.mxu0 0
        %646 = vmatpush1.bf16.msra.mxu0 %v576
        %647 = vmatprep.subr.bf16.mxu0 0
        %648 = vmatpush2.bf16.msra.mxu0 0
        %649 = vmatprep.subr.bf16.mxu0 0
        %650 = vmatpush2.bf16.msra.mxu0 0
        %651 = vmatprep.subr.bf16.mxu0 0
        %652 = vmatpush2.bf16.msra.mxu0 0
        %653 = vmatprep.subr.bf16.mxu0 0
        %654 = vmatpush2.bf16.msra.mxu0 0
        %655 = vmatprep.subr.bf16.mxu0 0
        %656 = vmatpush2.bf16.msra.mxu0 0
        %657 = vmatprep.subr.bf16.mxu0 0
        %658 = vmatpush2.bf16.msra.mxu0 0
        %659 = vmatprep.subr.bf16.mxu0 0
        %660 = vmatpush2.bf16.msra.mxu0 0
        %661 = vmatprep.subr.bf16.mxu0 0
        %662 = vmatpush2.bf16.msra.mxu0 0
        %663 = vmatprep.mubr.bf16.mxu0 0
        %664 = vmatmul.mubr.bf16.gmra.mxu0 %v564
        %v665 = vpop.f32.mrf.mxu0
        %v666 = vadd.f32 0.0, %v665
        %v667 = vpop.f32.mrf.mxu0
        %v668 = vpop.f32.mrf.mxu0
        %v669 = vadd.f32 0.0, %v668
        %v670 = vpop.f32.mrf.mxu0
        %671 = vmatprep.mubr.bf16.mxu0 0
        %672 = vmatmul.mubr.bf16.gmra.mxu0 %v567
        %v673 = vpop.f32.mrf.mxu0
        %v674 = vadd.f32 0.0, %v673
        %v675 = vpop.f32.mrf.mxu0
        %v676 = vpop.f32.mrf.mxu0
        %v677 = vadd.f32 0.0, %v676
        %v678 = vpop.f32.mrf.mxu0
        %679 = vdwg.mxu0
        %v680 = vadd.f32 %v454, %v613
        %v681 = vadd.f32 %v456, %v615
        %v682 = vadd.f32 %v507, %v666
        %v683 = vadd.f32 %v458, %v617
        %v684 = vadd.f32 %v460, %v619
        %v685 = vadd.f32 %v510, %v669
        %v686 = vadd.f32 %v464, %v623
        %v687 = vadd.f32 %v466, %v625
        %v688 = vadd.f32 %v515, %v674
        %v689 = vadd.f32 %v468, %v627
        %v690 = vadd.f32 %v470, %v629
        %v691 = vadd.f32 %v518, %v677
        %v692 = vld [vmem:[%s214] sm:$0x3f]
        %s693 = scalar_lea.vmem %s219, 48
        %v694 = vld [vmem:[%s693] sm:$0xf]
        %v695 = vld [vmem:[%s693 + $0x4] sm:$0xf]
        %v696 = vld [vmem:[%s693 + $0x8] sm:$0xf]
        %v697 = vld [vmem:[%s693 + $0xc] sm:$0xf]
        %v702 = vunpack.c.l.b16 %v694
        %v703 = vunpack.c.l.b16 %v695
        %v704 = vunpack.c.l.b16 %v696
        %v705 = vunpack.c.l.b16 %v697
        %v706 = vpack.c.b16 %v703, %v702
        %v707 = vpack.c.b16 %v705, %v704
        %v709 = vcombine.high %v692, %v692
        %v711 = vunpack.c.l.s4 1983009808
        %v712 = vunpack.c.0.s8 %v711
        %v713 = vlaneseq
        %v714 = vshrl.u32 %v713, 7
        %v715 = vsub.s32 %v712, %v714
        %v716 = vrot.slane %v692, %v715
        %v718 = vunpack.c.l.s4 1983009808
        %v719 = vunpack.c.0.s8 %v718
        %v720 = vlaneseq
        %v721 = vshrl.u32 %v720, 7
        %v722 = vsub.s32 %v719, %v721
        %v723 = vrot.slane %v709, %v722
        %v724 = vcombine.high %v716, %v716
        %725 = vrot.lane.b32.xlu0 %v716, 110
        %v726 = vpop.permute.xlu0 %725
        %727 = vrot.lane.b32.xlu0 %v724, 110
        %v728 = vpop.permute.xlu0 %727
        %729 = vrot.lane.b32.xlu0 %v723, 110
        %v730 = vpop.permute.xlu0 %729
        %vm731 = vcmask 900096
        %v732 = vsel %vm731, %v726, %v728
        %v733 = vsel %vm731, %v728, %v730
        %v735 = vsel %vm275, %v706, 0
        %v738 = vsel %vm275, %v707, 0
        %v741 = vsel %vm282, %v732, 0
        %v744 = vsel %vm282, %v733, 0
        %v747 = vsel %vm282, %v730, 0
        %749 = vmatprep.subr.bf16.mxu0 0
        %750 = vmatpush1.bf16.msra.mxu0 0
        %751 = vmatprep.subr.bf16.mxu0 0
        %752 = vmatpush1.bf16.msra.mxu0 0
        %753 = vmatprep.subr.bf16.mxu0 0
        %754 = vmatpush1.bf16.msra.mxu0 0
        %755 = vmatprep.subr.bf16.mxu0 0
        %756 = vmatpush1.bf16.msra.mxu0 0
        %757 = vmatprep.subr.bf16.mxu0 0
        %758 = vmatpush1.bf16.msra.mxu0 0
        %759 = vmatprep.subr.bf16.mxu0 0
        %760 = vmatpush1.bf16.msra.mxu0 0
        %761 = vmatprep.subr.bf16.mxu0 0
        %762 = vmatpush1.bf16.msra.mxu0 0
        %763 = vmatprep.subr.bf16.mxu0 %v744
        %764 = vmatpush1.bf16.msra.mxu0 %v741
        %765 = vmatprep.subr.bf16.mxu0 0
        %766 = vmatpush2.bf16.msra.mxu0 0
        %767 = vmatprep.subr.bf16.mxu0 0
        %768 = vmatpush2.bf16.msra.mxu0 0
        %769 = vmatprep.subr.bf16.mxu0 0
        %770 = vmatpush2.bf16.msra.mxu0 0
        %771 = vmatprep.subr.bf16.mxu0 0
        %772 = vmatpush2.bf16.msra.mxu0 0
        %773 = vmatprep.subr.bf16.mxu0 0
        %774 = vmatpush2.bf16.msra.mxu0 0
        %775 = vmatprep.subr.bf16.mxu0 0
        %776 = vmatpush2.bf16.msra.mxu0 0
        %777 = vmatprep.subr.bf16.mxu0 0
        %778 = vmatpush2.bf16.msra.mxu0 0
        %779 = vmatprep.subr.bf16.mxu0 0
        %780 = vmatpush2.bf16.msra.mxu0 0
        %781 = vmatprep.mubr.bf16.mxu0 0
        %782 = vmatmul.mubr.bf16.gmra.mxu0 %v735
        %v783 = vpop.f32.mrf.mxu0
        %v784 = vadd.f32 0.0, %v783
        %v785 = vpop.f32.mrf.mxu0
        %v786 = vadd.f32 0.0, %v785
        %v787 = vpop.f32.mrf.mxu0
        %v788 = vadd.f32 0.0, %v787
        %v789 = vpop.f32.mrf.mxu0
        %v790 = vadd.f32 0.0, %v789
        %791 = vmatprep.mubr.bf16.mxu0 0
        %792 = vmatmul.mubr.bf16.gmra.mxu0 %v738
        %v793 = vpop.f32.mrf.mxu0
        %v794 = vadd.f32 0.0, %v793
        %v795 = vpop.f32.mrf.mxu0
        %v796 = vadd.f32 0.0, %v795
        %v797 = vpop.f32.mrf.mxu0
        %v798 = vadd.f32 0.0, %v797
        %v799 = vpop.f32.mrf.mxu0
        %v800 = vadd.f32 0.0, %v799
        %801 = vdwg.mxu0
        %802 = vmatprep.subr.bf16.mxu0 0
        %803 = vmatpush1.bf16.msra.mxu0 0
        %804 = vmatprep.subr.bf16.mxu0 0
        %805 = vmatpush1.bf16.msra.mxu0 0
        %806 = vmatprep.subr.bf16.mxu0 0
        %807 = vmatpush1.bf16.msra.mxu0 0
        %808 = vmatprep.subr.bf16.mxu0 0
        %809 = vmatpush1.bf16.msra.mxu0 0
        %810 = vmatprep.subr.bf16.mxu0 0
        %811 = vmatpush1.bf16.msra.mxu0 0
        %812 = vmatprep.subr.bf16.mxu0 0
        %813 = vmatpush1.bf16.msra.mxu0 0
        %814 = vmatprep.subr.bf16.mxu0 0
        %815 = vmatpush1.bf16.msra.mxu0 0
        %816 = vmatprep.subr.bf16.mxu0 0
        %817 = vmatpush1.bf16.msra.mxu0 %v747
        %818 = vmatprep.subr.bf16.mxu0 0
        %819 = vmatpush2.bf16.msra.mxu0 0
        %820 = vmatprep.subr.bf16.mxu0 0
        %821 = vmatpush2.bf16.msra.mxu0 0
        %822 = vmatprep.subr.bf16.mxu0 0
        %823 = vmatpush2.bf16.msra.mxu0 0
        %824 = vmatprep.subr.bf16.mxu0 0
        %825 = vmatpush2.bf16.msra.mxu0 0
        %826 = vmatprep.subr.bf16.mxu0 0
        %827 = vmatpush2.bf16.msra.mxu0 0
        %828 = vmatprep.subr.bf16.mxu0 0
        %829 = vmatpush2.bf16.msra.mxu0 0
        %830 = vmatprep.subr.bf16.mxu0 0
        %831 = vmatpush2.bf16.msra.mxu0 0
        %832 = vmatprep.subr.bf16.mxu0 0
        %833 = vmatpush2.bf16.msra.mxu0 0
        %834 = vmatprep.mubr.bf16.mxu0 0
        %835 = vmatmul.mubr.bf16.gmra.mxu0 %v735
        %v836 = vpop.f32.mrf.mxu0
        %v837 = vadd.f32 0.0, %v836
        %v838 = vpop.f32.mrf.mxu0
        %v839 = vpop.f32.mrf.mxu0
        %v840 = vadd.f32 0.0, %v839
        %v841 = vpop.f32.mrf.mxu0
        %842 = vmatprep.mubr.bf16.mxu0 0
        %843 = vmatmul.mubr.bf16.gmra.mxu0 %v738
        %v844 = vpop.f32.mrf.mxu0
        %v845 = vadd.f32 0.0, %v844
        %v846 = vpop.f32.mrf.mxu0
        %v847 = vpop.f32.mrf.mxu0
        %v848 = vadd.f32 0.0, %v847
        %v849 = vpop.f32.mrf.mxu0
        %850 = vdwg.mxu0
        %v851 = vadd.f32 %v680, %v784
        %v852 = vadd.f32 %v681, %v786
        %v853 = vadd.f32 %v682, %v837
        %v854 = vadd.f32 %v683, %v788
        %v855 = vadd.f32 %v684, %v790
        %v856 = vadd.f32 %v685, %v840
        %v857 = vadd.f32 %v686, %v794
        %v858 = vadd.f32 %v687, %v796
        %v859 = vadd.f32 %v688, %v845
        %v860 = vadd.f32 %v689, %v798
        %v861 = vadd.f32 %v690, %v800
        %v862 = vadd.f32 %v691, %v848
        %v863 = vld [vmem:[%s214] sm:$0x3f]
        %s864 = scalar_lea.vmem %s219, 64
        %v865 = vld [vmem:[%s864] sm:$0xf]
        %v866 = vld [vmem:[%s864 + $0x4] sm:$0xf]
        %v867 = vld [vmem:[%s864 + $0x8] sm:$0xf]
        %v868 = vld [vmem:[%s864 + $0xc] sm:$0xf]
        %v873 = vunpack.c.l.b16 %v865
        %v874 = vunpack.c.l.b16 %v866
        %v875 = vunpack.c.l.b16 %v867
        %v876 = vunpack.c.l.b16 %v868
        %v877 = vpack.c.b16 %v874, %v873
        %v878 = vpack.c.b16 %v876, %v875
        %v880 = vcombine.high %v863, %v863
        %v882 = vunpack.c.l.s4 1983009808
        %v883 = vunpack.c.0.s8 %v882
        %v884 = vlaneseq
        %v885 = vshrl.u32 %v884, 7
        %v886 = vsub.s32 %v883, %v885
        %v887 = vrot.slane %v863, %v886
        %v889 = vunpack.c.l.s4 1983009808
        %v890 = vunpack.c.0.s8 %v889
        %v891 = vlaneseq
        %v892 = vshrl.u32 %v891, 7
        %v893 = vsub.s32 %v890, %v892
        %v894 = vrot.slane %v880, %v893
        %v895 = vcombine.high %v887, %v887
        %896 = vrot.lane.b32.xlu0 %v887, 109
        %v897 = vpop.permute.xlu0 %896
        %898 = vrot.lane.b32.xlu0 %v895, 109
        %v899 = vpop.permute.xlu0 %898
        %900 = vrot.lane.b32.xlu0 %v894, 109
        %v901 = vpop.permute.xlu0 %900
        %vm902 = vcmask 891904
        %v903 = vsel %vm902, %v897, %v899
        %v904 = vsel %vm902, %v899, %v901
        %v906 = vsel %vm275, %v877, 0
        %v909 = vsel %vm275, %v878, 0
        %v912 = vsel %vm282, %v903, 0
        %v915 = vsel %vm282, %v904, 0
        %v918 = vsel %vm282, %v901, 0
        %920 = vmatprep.subr.bf16.mxu0 0
        %921 = vmatpush1.bf16.msra.mxu0 0
        %922 = vmatprep.subr.bf16.mxu0 0
        %923 = vmatpush1.bf16.msra.mxu0 0
        %924 = vmatprep.subr.bf16.mxu0 0
        %925 = vmatpush1.bf16.msra.mxu0 0
        %926 = vmatprep.subr.bf16.mxu0 0
        %927 = vmatpush1.bf16.msra.mxu0 0
        %928 = vmatprep.subr.bf16.mxu0 0
        %929 = vmatpush1.bf16.msra.mxu0 0
        %930 = vmatprep.subr.bf16.mxu0 0
        %931 = vmatpush1.bf16.msra.mxu0 0
        %932 = vmatprep.subr.bf16.mxu0 0
        %933 = vmatpush1.bf16.msra.mxu0 0
        %934 = vmatprep.subr.bf16.mxu0 %v915
        %935 = vmatpush1.bf16.msra.mxu0 %v912
        %936 = vmatprep.subr.bf16.mxu0 0
        %937 = vmatpush2.bf16.msra.mxu0 0
        %938 = vmatprep.subr.bf16.mxu0 0
        %939 = vmatpush2.bf16.msra.mxu0 0
        %940 = vmatprep.subr.bf16.mxu0 0
        %941 = vmatpush2.bf16.msra.mxu0 0
        %942 = vmatprep.subr.bf16.mxu0 0
        %943 = vmatpush2.bf16.msra.mxu0 0
        %944 = vmatprep.subr.bf16.mxu0 0
        %945 = vmatpush2.bf16.msra.mxu0 0
        %946 = vmatprep.subr.bf16.mxu0 0
        %947 = vmatpush2.bf16.msra.mxu0 0
        %948 = vmatprep.subr.bf16.mxu0 0
        %949 = vmatpush2.bf16.msra.mxu0 0
        %950 = vmatprep.subr.bf16.mxu0 0
        %951 = vmatpush2.bf16.msra.mxu0 0
        %952 = vmatprep.mubr.bf16.mxu0 0
        %953 = vmatmul.mubr.bf16.gmra.mxu0 %v906
        %v954 = vpop.f32.mrf.mxu0
        %v955 = vadd.f32 0.0, %v954
        %v956 = vpop.f32.mrf.mxu0
        %v957 = vadd.f32 0.0, %v956
        %v958 = vpop.f32.mrf.mxu0
        %v959 = vadd.f32 0.0, %v958
        %v960 = vpop.f32.mrf.mxu0
        %v961 = vadd.f32 0.0, %v960
        %962 = vmatprep.mubr.bf16.mxu0 0
        %963 = vmatmul.mubr.bf16.gmra.mxu0 %v909
        %v964 = vpop.f32.mrf.mxu0
        %v965 = vadd.f32 0.0, %v964
        %v966 = vpop.f32.mrf.mxu0
        %v967 = vadd.f32 0.0, %v966
        %v968 = vpop.f32.mrf.mxu0
        %v969 = vadd.f32 0.0, %v968
        %v970 = vpop.f32.mrf.mxu0
        %v971 = vadd.f32 0.0, %v970
        %972 = vdwg.mxu0
        %973 = vmatprep.subr.bf16.mxu0 0
        %974 = vmatpush1.bf16.msra.mxu0 0
        %975 = vmatprep.subr.bf16.mxu0 0
        %976 = vmatpush1.bf16.msra.mxu0 0
        %977 = vmatprep.subr.bf16.mxu0 0
        %978 = vmatpush1.bf16.msra.mxu0 0
        %979 = vmatprep.subr.bf16.mxu0 0
        %980 = vmatpush1.bf16.msra.mxu0 0
        %981 = vmatprep.subr.bf16.mxu0 0
        %982 = vmatpush1.bf16.msra.mxu0 0
        %983 = vmatprep.subr.bf16.mxu0 0
        %984 = vmatpush1.bf16.msra.mxu0 0
        %985 = vmatprep.subr.bf16.mxu0 0
        %986 = vmatpush1.bf16.msra.mxu0 0
        %987 = vmatprep.subr.bf16.mxu0 0
        %988 = vmatpush1.bf16.msra.mxu0 %v918
        %989 = vmatprep.subr.bf16.mxu0 0
        %990 = vmatpush2.bf16.msra.mxu0 0
        %991 = vmatprep.subr.bf16.mxu0 0
        %992 = vmatpush2.bf16.msra.mxu0 0
        %993 = vmatprep.subr.bf16.mxu0 0
        %994 = vmatpush2.bf16.msra.mxu0 0
        %995 = vmatprep.subr.bf16.mxu0 0
        %996 = vmatpush2.bf16.msra.mxu0 0
        %997 = vmatprep.subr.bf16.mxu0 0
        %998 = vmatpush2.bf16.msra.mxu0 0
        %999 = vmatprep.subr.bf16.mxu0 0
        %1000 = vmatpush2.bf16.msra.mxu0 0
        %1001 = vmatprep.subr.bf16.mxu0 0
        %1002 = vmatpush2.bf16.msra.mxu0 0
        %1003 = vmatprep.subr.bf16.mxu0 0
        %1004 = vmatpush2.bf16.msra.mxu0 0
        %1005 = vmatprep.mubr.bf16.mxu0 0
        %1006 = vmatmul.mubr.bf16.gmra.mxu0 %v906
        %v1007 = vpop.f32.mrf.mxu0
        %v1008 = vadd.f32 0.0, %v1007
        %v1009 = vpop.f32.mrf.mxu0
        %v1010 = vpop.f32.mrf.mxu0
        %v1011 = vadd.f32 0.0, %v1010
        %v1012 = vpop.f32.mrf.mxu0
        %1013 = vmatprep.mubr.bf16.mxu0 0
        %1014 = vmatmul.mubr.bf16.gmra.mxu0 %v909
        %v1015 = vpop.f32.mrf.mxu0
        %v1016 = vadd.f32 0.0, %v1015
        %v1017 = vpop.f32.mrf.mxu0
        %v1018 = vpop.f32.mrf.mxu0
        %v1019 = vadd.f32 0.0, %v1018
        %v1020 = vpop.f32.mrf.mxu0
        %1021 = vdwg.mxu0
        %v1022 = vadd.f32 %v851, %v955
        %v1023 = vadd.f32 %v852, %v957
        %v1024 = vadd.f32 %v853, %v1008
        %v1025 = vadd.f32 %v854, %v959
        %v1026 = vadd.f32 %v855, %v961
        %v1027 = vadd.f32 %v856, %v1011
        %v1028 = vadd.f32 %v857, %v965
        %v1029 = vadd.f32 %v858, %v967
        %v1030 = vadd.f32 %v859, %v1016
        %v1031 = vadd.f32 %v860, %v969
        %v1032 = vadd.f32 %v861, %v971
        %v1033 = vadd.f32 %v862, %v1019
        %v1034 = vld [vmem:[%s214] sm:$0x3f]
        %s1035 = scalar_lea.vmem %s219, 80
        %v1036 = vld [vmem:[%s1035] sm:$0xf]
        %v1037 = vld [vmem:[%s1035 + $0x4] sm:$0xf]
        %v1038 = vld [vmem:[%s1035 + $0x8] sm:$0xf]
        %v1039 = vld [vmem:[%s1035 + $0xc] sm:$0xf]
        %v1044 = vunpack.c.l.b16 %v1036
        %v1045 = vunpack.c.l.b16 %v1037
        %v1046 = vunpack.c.l.b16 %v1038
        %v1047 = vunpack.c.l.b16 %v1039
        %v1048 = vpack.c.b16 %v1045, %v1044
        %v1049 = vpack.c.b16 %v1047, %v1046
        %v1051 = vcombine.high %v1034, %v1034
        %v1053 = vunpack.c.l.s4 1983009808
        %v1054 = vunpack.c.0.s8 %v1053
        %v1055 = vlaneseq
        %v1056 = vshrl.u32 %v1055, 7
        %v1057 = vsub.s32 %v1054, %v1056
        %v1058 = vrot.slane %v1034, %v1057
        %v1060 = vunpack.c.l.s4 1983009808
        %v1061 = vunpack.c.0.s8 %v1060
        %v1062 = vlaneseq
        %v1063 = vshrl.u32 %v1062, 7
        %v1064 = vsub.s32 %v1061, %v1063
        %v1065 = vrot.slane %v1051, %v1064
        %v1066 = vcombine.high %v1058, %v1058
        %1067 = vrot.lane.b32.xlu0 %v1058, 108
        %v1068 = vpop.permute.xlu0 %1067
        %1069 = vrot.lane.b32.xlu0 %v1066, 108
        %v1070 = vpop.permute.xlu0 %1069
        %1071 = vrot.lane.b32.xlu0 %v1065, 108
        %v1072 = vpop.permute.xlu0 %1071
        %vm1073 = vcmask 883712
        %v1074 = vsel %vm1073, %v1068, %v1070
        %v1075 = vsel %vm1073, %v1070, %v1072
        %v1077 = vsel %vm275, %v1048, 0
        %v1080 = vsel %vm275, %v1049, 0
        %v1083 = vsel %vm282, %v1074, 0
        %v1086 = vsel %vm282, %v1075, 0
        %v1089 = vsel %vm282, %v1072, 0
        %1091 = vmatprep.subr.bf16.mxu0 0
        %1092 = vmatpush1.bf16.msra.mxu0 0
        %1093 = vmatprep.subr.bf16.mxu0 0
        %1094 = vmatpush1.bf16.msra.mxu0 0
        %1095 = vmatprep.subr.bf16.mxu0 0
        %1096 = vmatpush1.bf16.msra.mxu0 0
        %1097 = vmatprep.subr.bf16.mxu0 0
        %1098 = vmatpush1.bf16.msra.mxu0 0
        %1099 = vmatprep.subr.bf16.mxu0 0
        %1100 = vmatpush1.bf16.msra.mxu0 0
        %1101 = vmatprep.subr.bf16.mxu0 0
        %1102 = vmatpush1.bf16.msra.mxu0 0
        %1103 = vmatprep.subr.bf16.mxu0 0
        %1104 = vmatpush1.bf16.msra.mxu0 0
        %1105 = vmatprep.subr.bf16.mxu0 %v1086
        %1106 = vmatpush1.bf16.msra.mxu0 %v1083
        %1107 = vmatprep.subr.bf16.mxu0 0
        %1108 = vmatpush2.bf16.msra.mxu0 0
        %1109 = vmatprep.subr.bf16.mxu0 0
        %1110 = vmatpush2.bf16.msra.mxu0 0
        %1111 = vmatprep.subr.bf16.mxu0 0
        %1112 = vmatpush2.bf16.msra.mxu0 0
        %1113 = vmatprep.subr.bf16.mxu0 0
        %1114 = vmatpush2.bf16.msra.mxu0 0
        %1115 = vmatprep.subr.bf16.mxu0 0
        %1116 = vmatpush2.bf16.msra.mxu0 0
        %1117 = vmatprep.subr.bf16.mxu0 0
        %1118 = vmatpush2.bf16.msra.mxu0 0
        %1119 = vmatprep.subr.bf16.mxu0 0
        %1120 = vmatpush2.bf16.msra.mxu0 0
        %1121 = vmatprep.subr.bf16.mxu0 0
        %1122 = vmatpush2.bf16.msra.mxu0 0
        %1123 = vmatprep.mubr.bf16.mxu0 0
        %1124 = vmatmul.mubr.bf16.gmra.mxu0 %v1077
        %v1125 = vpop.f32.mrf.mxu0
        %v1126 = vadd.f32 0.0, %v1125
        %v1127 = vpop.f32.mrf.mxu0
        %v1128 = vadd.f32 0.0, %v1127
        %v1129 = vpop.f32.mrf.mxu0
        %v1130 = vadd.f32 0.0, %v1129
        %v1131 = vpop.f32.mrf.mxu0
        %v1132 = vadd.f32 0.0, %v1131
        %1133 = vmatprep.mubr.bf16.mxu0 0
        %1134 = vmatmul.mubr.bf16.gmra.mxu0 %v1080
        %v1135 = vpop.f32.mrf.mxu0
        %v1136 = vadd.f32 0.0, %v1135
        %v1137 = vpop.f32.mrf.mxu0
        %v1138 = vadd.f32 0.0, %v1137
        %v1139 = vpop.f32.mrf.mxu0
        %v1140 = vadd.f32 0.0, %v1139
        %v1141 = vpop.f32.mrf.mxu0
        %v1142 = vadd.f32 0.0, %v1141
        %1143 = vdwg.mxu0
        %1144 = vmatprep.subr.bf16.mxu0 0
        %1145 = vmatpush1.bf16.msra.mxu0 0
        %1146 = vmatprep.subr.bf16.mxu0 0
        %1147 = vmatpush1.bf16.msra.mxu0 0
        %1148 = vmatprep.subr.bf16.mxu0 0
        %1149 = vmatpush1.bf16.msra.mxu0 0
        %1150 = vmatprep.subr.bf16.mxu0 0
        %1151 = vmatpush1.bf16.msra.mxu0 0
        %1152 = vmatprep.subr.bf16.mxu0 0
        %1153 = vmatpush1.bf16.msra.mxu0 0
        %1154 = vmatprep.subr.bf16.mxu0 0
        %1155 = vmatpush1.bf16.msra.mxu0 0
        %1156 = vmatprep.subr.bf16.mxu0 0
        %1157 = vmatpush1.bf16.msra.mxu0 0
        %1158 = vmatprep.subr.bf16.mxu0 0
        %1159 = vmatpush1.bf16.msra.mxu0 %v1089
        %1160 = vmatprep.subr.bf16.mxu0 0
        %1161 = vmatpush2.bf16.msra.mxu0 0
        %1162 = vmatprep.subr.bf16.mxu0 0
        %1163 = vmatpush2.bf16.msra.mxu0 0
        %1164 = vmatprep.subr.bf16.mxu0 0
        %1165 = vmatpush2.bf16.msra.mxu0 0
        %1166 = vmatprep.subr.bf16.mxu0 0
        %1167 = vmatpush2.bf16.msra.mxu0 0
        %1168 = vmatprep.subr.bf16.mxu0 0
        %1169 = vmatpush2.bf16.msra.mxu0 0
        %1170 = vmatprep.subr.bf16.mxu0 0
        %1171 = vmatpush2.bf16.msra.mxu0 0
        %1172 = vmatprep.subr.bf16.mxu0 0
        %1173 = vmatpush2.bf16.msra.mxu0 0
        %1174 = vmatprep.subr.bf16.mxu0 0
        %1175 = vmatpush2.bf16.msra.mxu0 0
        %1176 = vmatprep.mubr.bf16.mxu0 0
        %1177 = vmatmul.mubr.bf16.gmra.mxu0 %v1077
        %v1178 = vpop.f32.mrf.mxu0
        %v1179 = vadd.f32 0.0, %v1178
        %v1180 = vpop.f32.mrf.mxu0
        %v1181 = vpop.f32.mrf.mxu0
        %v1182 = vadd.f32 0.0, %v1181
        %v1183 = vpop.f32.mrf.mxu0
        %1184 = vmatprep.mubr.bf16.mxu0 0
        %1185 = vmatmul.mubr.bf16.gmra.mxu0 %v1080
        %v1186 = vpop.f32.mrf.mxu0
        %v1187 = vadd.f32 0.0, %v1186
        %v1188 = vpop.f32.mrf.mxu0
        %v1189 = vpop.f32.mrf.mxu0
        %v1190 = vadd.f32 0.0, %v1189
        %v1191 = vpop.f32.mrf.mxu0
        %1192 = vdwg.mxu0
        %v1193 = vadd.f32 %v1022, %v1126
        %v1194 = vadd.f32 %v1023, %v1128
        %v1195 = vadd.f32 %v1024, %v1179
        %v1196 = vadd.f32 %v1025, %v1130
        %v1197 = vadd.f32 %v1026, %v1132
        %v1198 = vadd.f32 %v1027, %v1182
        %v1199 = vadd.f32 %v1028, %v1136
        %v1200 = vadd.f32 %v1029, %v1138
        %v1201 = vadd.f32 %v1030, %v1187
        %v1202 = vadd.f32 %v1031, %v1140
        %v1203 = vadd.f32 %v1032, %v1142
        %v1204 = vadd.f32 %v1033, %v1190
        %v1205 = vld [vmem:[%s214] sm:$0x3f]
        %s1206 = scalar_lea.vmem %s219, 96
        %v1207 = vld [vmem:[%s1206] sm:$0xf]
        %v1208 = vld [vmem:[%s1206 + $0x4] sm:$0xf]
        %v1209 = vld [vmem:[%s1206 + $0x8] sm:$0xf]
        %v1210 = vld [vmem:[%s1206 + $0xc] sm:$0xf]
        %v1215 = vunpack.c.l.b16 %v1207
        %v1216 = vunpack.c.l.b16 %v1208
        %v1217 = vunpack.c.l.b16 %v1209
        %v1218 = vunpack.c.l.b16 %v1210
        %v1219 = vpack.c.b16 %v1216, %v1215
        %v1220 = vpack.c.b16 %v1218, %v1217
        %v1222 = vcombine.high %v1205, %v1205
        %v1224 = vunpack.c.l.s4 1983009808
        %v1225 = vunpack.c.0.s8 %v1224
        %v1226 = vlaneseq
        %v1227 = vshrl.u32 %v1226, 7
        %v1228 = vsub.s32 %v1225, %v1227
        %v1229 = vrot.slane %v1205, %v1228
        %v1231 = vunpack.c.l.s4 1983009808
        %v1232 = vunpack.c.0.s8 %v1231
        %v1233 = vlaneseq
        %v1234 = vshrl.u32 %v1233, 7
        %v1235 = vsub.s32 %v1232, %v1234
        %v1236 = vrot.slane %v1222, %v1235
        %v1237 = vcombine.high %v1229, %v1229
        %1238 = vrot.lane.b32.xlu0 %v1229, 92
        %v1239 = vpop.permute.xlu0 %1238
        %1240 = vrot.lane.b32.xlu0 %v1237, 92
        %v1241 = vpop.permute.xlu0 %1240
        %1242 = vrot.lane.b32.xlu0 %v1236, 92
        %v1243 = vpop.permute.xlu0 %1242
        %vm1244 = vcmask 752640
        %v1245 = vsel %vm1244, %v1239, %v1241
        %v1246 = vsel %vm1244, %v1241, %v1243
        %v1248 = vsel %vm275, %v1219, 0
        %v1251 = vsel %vm275, %v1220, 0
        %v1254 = vsel %vm282, %v1245, 0
        %v1257 = vsel %vm282, %v1246, 0
        %v1260 = vsel %vm282, %v1243, 0
        %1262 = vmatprep.subr.bf16.mxu0 0
        %1263 = vmatpush1.bf16.msra.mxu0 0
        %1264 = vmatprep.subr.bf16.mxu0 0
        %1265 = vmatpush1.bf16.msra.mxu0 0
        %1266 = vmatprep.subr.bf16.mxu0 0
        %1267 = vmatpush1.bf16.msra.mxu0 0
        %1268 = vmatprep.subr.bf16.mxu0 0
        %1269 = vmatpush1.bf16.msra.mxu0 0
        %1270 = vmatprep.subr.bf16.mxu0 0
        %1271 = vmatpush1.bf16.msra.mxu0 0
        %1272 = vmatprep.subr.bf16.mxu0 0
        %1273 = vmatpush1.bf16.msra.mxu0 0
        %1274 = vmatprep.subr.bf16.mxu0 0
        %1275 = vmatpush1.bf16.msra.mxu0 0
        %1276 = vmatprep.subr.bf16.mxu0 %v1257
        %1277 = vmatpush1.bf16.msra.mxu0 %v1254
        %1278 = vmatprep.subr.bf16.mxu0 0
        %1279 = vmatpush2.bf16.msra.mxu0 0
        %1280 = vmatprep.subr.bf16.mxu0 0
        %1281 = vmatpush2.bf16.msra.mxu0 0
        %1282 = vmatprep.subr.bf16.mxu0 0
        %1283 = vmatpush2.bf16.msra.mxu0 0
        %1284 = vmatprep.subr.bf16.mxu0 0
        %1285 = vmatpush2.bf16.msra.mxu0 0
        %1286 = vmatprep.subr.bf16.mxu0 0
        %1287 = vmatpush2.bf16.msra.mxu0 0
        %1288 = vmatprep.subr.bf16.mxu0 0
        %1289 = vmatpush2.bf16.msra.mxu0 0
        %1290 = vmatprep.subr.bf16.mxu0 0
        %1291 = vmatpush2.bf16.msra.mxu0 0
        %1292 = vmatprep.subr.bf16.mxu0 0
        %1293 = vmatpush2.bf16.msra.mxu0 0
        %1294 = vmatprep.mubr.bf16.mxu0 0
        %1295 = vmatmul.mubr.bf16.gmra.mxu0 %v1248
        %v1296 = vpop.f32.mrf.mxu0
        %v1297 = vadd.f32 0.0, %v1296
        %v1298 = vpop.f32.mrf.mxu0
        %v1299 = vadd.f32 0.0, %v1298
        %v1300 = vpop.f32.mrf.mxu0
        %v1301 = vadd.f32 0.0, %v1300
        %v1302 = vpop.f32.mrf.mxu0
        %v1303 = vadd.f32 0.0, %v1302
        %1304 = vmatprep.mubr.bf16.mxu0 0
        %1305 = vmatmul.mubr.bf16.gmra.mxu0 %v1251
        %v1306 = vpop.f32.mrf.mxu0
        %v1307 = vadd.f32 0.0, %v1306
        %v1308 = vpop.f32.mrf.mxu0
        %v1309 = vadd.f32 0.0, %v1308
        %v1310 = vpop.f32.mrf.mxu0
        %v1311 = vadd.f32 0.0, %v1310
        %v1312 = vpop.f32.mrf.mxu0
        %v1313 = vadd.f32 0.0, %v1312
        %1314 = vdwg.mxu0
        %1315 = vmatprep.subr.bf16.mxu0 0
        %1316 = vmatpush1.bf16.msra.mxu0 0
        %1317 = vmatprep.subr.bf16.mxu0 0
        %1318 = vmatpush1.bf16.msra.mxu0 0
        %1319 = vmatprep.subr.bf16.mxu0 0
        %1320 = vmatpush1.bf16.msra.mxu0 0
        %1321 = vmatprep.subr.bf16.mxu0 0
        %1322 = vmatpush1.bf16.msra.mxu0 0
        %1323 = vmatprep.subr.bf16.mxu0 0
        %1324 = vmatpush1.bf16.msra.mxu0 0
        %1325 = vmatprep.subr.bf16.mxu0 0
        %1326 = vmatpush1.bf16.msra.mxu0 0
        %1327 = vmatprep.subr.bf16.mxu0 0
        %1328 = vmatpush1.bf16.msra.mxu0 0
        %1329 = vmatprep.subr.bf16.mxu0 0
        %1330 = vmatpush1.bf16.msra.mxu0 %v1260
        %1331 = vmatprep.subr.bf16.mxu0 0
        %1332 = vmatpush2.bf16.msra.mxu0 0
        %1333 = vmatprep.subr.bf16.mxu0 0
        %1334 = vmatpush2.bf16.msra.mxu0 0
        %1335 = vmatprep.subr.bf16.mxu0 0
        %1336 = vmatpush2.bf16.msra.mxu0 0
        %1337 = vmatprep.subr.bf16.mxu0 0
        %1338 = vmatpush2.bf16.msra.mxu0 0
        %1339 = vmatprep.subr.bf16.mxu0 0
        %1340 = vmatpush2.bf16.msra.mxu0 0
        %1341 = vmatprep.subr.bf16.mxu0 0
        %1342 = vmatpush2.bf16.msra.mxu0 0
        %1343 = vmatprep.subr.bf16.mxu0 0
        %1344 = vmatpush2.bf16.msra.mxu0 0
        %1345 = vmatprep.subr.bf16.mxu0 0
        %1346 = vmatpush2.bf16.msra.mxu0 0
        %1347 = vmatprep.mubr.bf16.mxu0 0
        %1348 = vmatmul.mubr.bf16.gmra.mxu0 %v1248
        %v1349 = vpop.f32.mrf.mxu0
        %v1350 = vadd.f32 0.0, %v1349
        %v1351 = vpop.f32.mrf.mxu0
        %v1352 = vpop.f32.mrf.mxu0
        %v1353 = vadd.f32 0.0, %v1352
        %v1354 = vpop.f32.mrf.mxu0
        %1355 = vmatprep.mubr.bf16.mxu0 0
        %1356 = vmatmul.mubr.bf16.gmra.mxu0 %v1251
        %v1357 = vpop.f32.mrf.mxu0
        %v1358 = vadd.f32 0.0, %v1357
        %v1359 = vpop.f32.mrf.mxu0
        %v1360 = vpop.f32.mrf.mxu0
        %v1361 = vadd.f32 0.0, %v1360
        %v1362 = vpop.f32.mrf.mxu0
        %1363 = vdwg.mxu0
        %v1364 = vadd.f32 %v1193, %v1297
        %v1365 = vadd.f32 %v1194, %v1299
        %v1366 = vadd.f32 %v1195, %v1350
        %v1367 = vadd.f32 %v1196, %v1301
        %v1368 = vadd.f32 %v1197, %v1303
        %v1369 = vadd.f32 %v1198, %v1353
        %v1370 = vadd.f32 %v1199, %v1307
        %v1371 = vadd.f32 %v1200, %v1309
        %v1372 = vadd.f32 %v1201, %v1358
        %v1373 = vadd.f32 %v1202, %v1311
        %v1374 = vadd.f32 %v1203, %v1313
        %v1375 = vadd.f32 %v1204, %v1361
        %v1376 = vld [vmem:[%s214] sm:$0x3f]
        %s1377 = scalar_lea.vmem %s219, 112
        %v1378 = vld [vmem:[%s1377] sm:$0xf]
        %v1379 = vld [vmem:[%s1377 + $0x4] sm:$0xf]
        %v1380 = vld [vmem:[%s1377 + $0x8] sm:$0xf]
        %v1381 = vld [vmem:[%s1377 + $0xc] sm:$0xf]
        %v1386 = vunpack.c.l.b16 %v1378
        %v1387 = vunpack.c.l.b16 %v1379
        %v1388 = vunpack.c.l.b16 %v1380
        %v1389 = vunpack.c.l.b16 %v1381
        %v1390 = vpack.c.b16 %v1387, %v1386
        %v1391 = vpack.c.b16 %v1389, %v1388
        %v1393 = vcombine.high %v1376, %v1376
        %v1395 = vunpack.c.l.s4 1983009808
        %v1396 = vunpack.c.0.s8 %v1395
        %v1397 = vlaneseq
        %v1398 = vshrl.u32 %v1397, 7
        %v1399 = vsub.s32 %v1396, %v1398
        %v1400 = vrot.slane %v1376, %v1399
        %v1402 = vunpack.c.l.s4 1983009808
        %v1403 = vunpack.c.0.s8 %v1402
        %v1404 = vlaneseq
        %v1405 = vshrl.u32 %v1404, 7
        %v1406 = vsub.s32 %v1403, %v1405
        %v1407 = vrot.slane %v1393, %v1406
        %v1408 = vcombine.high %v1400, %v1400
        %1409 = vrot.lane.b32.xlu0 %v1400, 91
        %v1410 = vpop.permute.xlu0 %1409
        %1411 = vrot.lane.b32.xlu0 %v1408, 91
        %v1412 = vpop.permute.xlu0 %1411
        %1413 = vrot.lane.b32.xlu0 %v1407, 91
        %v1414 = vpop.permute.xlu0 %1413
        %vm1415 = vcmask 744448
        %v1416 = vsel %vm1415, %v1410, %v1412
        %v1417 = vsel %vm1415, %v1412, %v1414
        %v1419 = vsel %vm275, %v1390, 0
        %v1422 = vsel %vm275, %v1391, 0
        %v1425 = vsel %vm282, %v1416, 0
        %v1428 = vsel %vm282, %v1417, 0
        %v1431 = vsel %vm282, %v1414, 0
        %1433 = vmatprep.subr.bf16.mxu0 0
        %1434 = vmatpush1.bf16.msra.mxu0 0
        %1435 = vmatprep.subr.bf16.mxu0 0
        %1436 = vmatpush1.bf16.msra.mxu0 0
        %1437 = vmatprep.subr.bf16.mxu0 0
        %1438 = vmatpush1.bf16.msra.mxu0 0
        %1439 = vmatprep.subr.bf16.mxu0 0
        %1440 = vmatpush1.bf16.msra.mxu0 0
        %1441 = vmatprep.subr.bf16.mxu0 0
        %1442 = vmatpush1.bf16.msra.mxu0 0
        %1443 = vmatprep.subr.bf16.mxu0 0
        %1444 = vmatpush1.bf16.msra.mxu0 0
        %1445 = vmatprep.subr.bf16.mxu0 0
        %1446 = vmatpush1.bf16.msra.mxu0 0
        %1447 = vmatprep.subr.bf16.mxu0 %v1428
        %1448 = vmatpush1.bf16.msra.mxu0 %v1425
        %1449 = vmatprep.subr.bf16.mxu0 0
        %1450 = vmatpush2.bf16.msra.mxu0 0
        %1451 = vmatprep.subr.bf16.mxu0 0
        %1452 = vmatpush2.bf16.msra.mxu0 0
        %1453 = vmatprep.subr.bf16.mxu0 0
        %1454 = vmatpush2.bf16.msra.mxu0 0
        %1455 = vmatprep.subr.bf16.mxu0 0
        %1456 = vmatpush2.bf16.msra.mxu0 0
        %1457 = vmatprep.subr.bf16.mxu0 0
        %1458 = vmatpush2.bf16.msra.mxu0 0
        %1459 = vmatprep.subr.bf16.mxu0 0
        %1460 = vmatpush2.bf16.msra.mxu0 0
        %1461 = vmatprep.subr.bf16.mxu0 0
        %1462 = vmatpush2.bf16.msra.mxu0 0
        %1463 = vmatprep.subr.bf16.mxu0 0
        %1464 = vmatpush2.bf16.msra.mxu0 0
        %1465 = vmatprep.mubr.bf16.mxu0 0
        %1466 = vmatmul.mubr.bf16.gmra.mxu0 %v1419
        %v1467 = vpop.f32.mrf.mxu0
        %v1468 = vadd.f32 0.0, %v1467
        %v1469 = vpop.f32.mrf.mxu0
        %v1470 = vadd.f32 0.0, %v1469
        %v1471 = vpop.f32.mrf.mxu0
        %v1472 = vadd.f32 0.0, %v1471
        %v1473 = vpop.f32.mrf.mxu0
        %v1474 = vadd.f32 0.0, %v1473
        %1475 = vmatprep.mubr.bf16.mxu0 0
        %1476 = vmatmul.mubr.bf16.gmra.mxu0 %v1422
        %v1477 = vpop.f32.mrf.mxu0
        %v1478 = vadd.f32 0.0, %v1477
        %v1479 = vpop.f32.mrf.mxu0
        %v1480 = vadd.f32 0.0, %v1479
        %v1481 = vpop.f32.mrf.mxu0
        %v1482 = vadd.f32 0.0, %v1481
        %v1483 = vpop.f32.mrf.mxu0
        %v1484 = vadd.f32 0.0, %v1483
        %1485 = vdwg.mxu0
        %1486 = vmatprep.subr.bf16.mxu0 0
        %1487 = vmatpush1.bf16.msra.mxu0 0
        %1488 = vmatprep.subr.bf16.mxu0 0
        %1489 = vmatpush1.bf16.msra.mxu0 0
        %1490 = vmatprep.subr.bf16.mxu0 0
        %1491 = vmatpush1.bf16.msra.mxu0 0
        %1492 = vmatprep.subr.bf16.mxu0 0
        %1493 = vmatpush1.bf16.msra.mxu0 0
        %1494 = vmatprep.subr.bf16.mxu0 0
        %1495 = vmatpush1.bf16.msra.mxu0 0
        %1496 = vmatprep.subr.bf16.mxu0 0
        %1497 = vmatpush1.bf16.msra.mxu0 0
        %1498 = vmatprep.subr.bf16.mxu0 0
        %1499 = vmatpush1.bf16.msra.mxu0 0
        %1500 = vmatprep.subr.bf16.mxu0 0
        %1501 = vmatpush1.bf16.msra.mxu0 %v1431
        %1502 = vmatprep.subr.bf16.mxu0 0
        %1503 = vmatpush2.bf16.msra.mxu0 0
        %1504 = vmatprep.subr.bf16.mxu0 0
        %1505 = vmatpush2.bf16.msra.mxu0 0
        %1506 = vmatprep.subr.bf16.mxu0 0
        %1507 = vmatpush2.bf16.msra.mxu0 0
        %1508 = vmatprep.subr.bf16.mxu0 0
        %1509 = vmatpush2.bf16.msra.mxu0 0
        %1510 = vmatprep.subr.bf16.mxu0 0
        %1511 = vmatpush2.bf16.msra.mxu0 0
        %1512 = vmatprep.subr.bf16.mxu0 0
        %1513 = vmatpush2.bf16.msra.mxu0 0
        %1514 = vmatprep.subr.bf16.mxu0 0
        %1515 = vmatpush2.bf16.msra.mxu0 0
        %1516 = vmatprep.subr.bf16.mxu0 0
        %1517 = vmatpush2.bf16.msra.mxu0 0
        %1518 = vmatprep.mubr.bf16.mxu0 0
        %1519 = vmatmul.mubr.bf16.gmra.mxu0 %v1419
        %v1520 = vpop.f32.mrf.mxu0
        %v1521 = vadd.f32 0.0, %v1520
        %v1522 = vpop.f32.mrf.mxu0
        %v1523 = vpop.f32.mrf.mxu0
        %v1524 = vadd.f32 0.0, %v1523
        %v1525 = vpop.f32.mrf.mxu0
        %1526 = vmatprep.mubr.bf16.mxu0 0
        %1527 = vmatmul.mubr.bf16.gmra.mxu0 %v1422
        %v1528 = vpop.f32.mrf.mxu0
        %v1529 = vadd.f32 0.0, %v1528
        %v1530 = vpop.f32.mrf.mxu0
        %v1531 = vpop.f32.mrf.mxu0
        %v1532 = vadd.f32 0.0, %v1531
        %v1533 = vpop.f32.mrf.mxu0
        %1534 = vdwg.mxu0
        %v1535 = vadd.f32 %v1364, %v1468
        %v1536 = vadd.f32 %v1365, %v1470
        %v1537 = vadd.f32 %v1366, %v1521
        %v1538 = vadd.f32 %v1367, %v1472
        %v1539 = vadd.f32 %v1368, %v1474
        %v1540 = vadd.f32 %v1369, %v1524
        %v1541 = vadd.f32 %v1370, %v1478
        %v1542 = vadd.f32 %v1371, %v1480
        %v1543 = vadd.f32 %v1372, %v1529
        %v1544 = vadd.f32 %v1373, %v1482
        %v1545 = vadd.f32 %v1374, %v1484
        %v1546 = vadd.f32 %v1375, %v1532
        %v1547 = vld [vmem:[%s214] sm:$0x3f]
        %s1548 = scalar_lea.vmem %s219, 128
        %v1549 = vld [vmem:[%s1548] sm:$0xf]
        %v1550 = vld [vmem:[%s1548 + $0x4] sm:$0xf]
        %v1551 = vld [vmem:[%s1548 + $0x8] sm:$0xf]
        %v1552 = vld [vmem:[%s1548 + $0xc] sm:$0xf]
        %v1557 = vunpack.c.l.b16 %v1549
        %v1558 = vunpack.c.l.b16 %v1550
        %v1559 = vunpack.c.l.b16 %v1551
        %v1560 = vunpack.c.l.b16 %v1552
        %v1561 = vpack.c.b16 %v1558, %v1557
        %v1562 = vpack.c.b16 %v1560, %v1559
        %v1564 = vcombine.high %v1547, %v1547
        %v1566 = vunpack.c.l.s4 1983009808
        %v1567 = vunpack.c.0.s8 %v1566
        %v1568 = vlaneseq
        %v1569 = vshrl.u32 %v1568, 7
        %v1570 = vsub.s32 %v1567, %v1569
        %v1571 = vrot.slane %v1547, %v1570
        %v1573 = vunpack.c.l.s4 1983009808
        %v1574 = vunpack.c.0.s8 %v1573
        %v1575 = vlaneseq
        %v1576 = vshrl.u32 %v1575, 7
        %v1577 = vsub.s32 %v1574, %v1576
        %v1578 = vrot.slane %v1564, %v1577
        %v1579 = vcombine.high %v1571, %v1571
        %1580 = vrot.lane.b32.xlu0 %v1571, 90
        %v1581 = vpop.permute.xlu0 %1580
        %1582 = vrot.lane.b32.xlu0 %v1579, 90
        %v1583 = vpop.permute.xlu0 %1582
        %1584 = vrot.lane.b32.xlu0 %v1578, 90
        %v1585 = vpop.permute.xlu0 %1584
        %vm1586 = vcmask 736256
        %v1587 = vsel %vm1586, %v1581, %v1583
        %v1588 = vsel %vm1586, %v1583, %v1585
        %v1590 = vsel %vm275, %v1561, 0
        %v1593 = vsel %vm275, %v1562, 0
        %v1596 = vsel %vm282, %v1587, 0
        %v1599 = vsel %vm282, %v1588, 0
        %v1602 = vsel %vm282, %v1585, 0
        %1604 = vmatprep.subr.bf16.mxu0 0
        %1605 = vmatpush1.bf16.msra.mxu0 0
        %1606 = vmatprep.subr.bf16.mxu0 0
        %1607 = vmatpush1.bf16.msra.mxu0 0
        %1608 = vmatprep.subr.bf16.mxu0 0
        %1609 = vmatpush1.bf16.msra.mxu0 0
        %1610 = vmatprep.subr.bf16.mxu0 0
        %1611 = vmatpush1.bf16.msra.mxu0 0
        %1612 = vmatprep.subr.bf16.mxu0 0
        %1613 = vmatpush1.bf16.msra.mxu0 0
        %1614 = vmatprep.subr.bf16.mxu0 0
        %1615 = vmatpush1.bf16.msra.mxu0 0
        %1616 = vmatprep.subr.bf16.mxu0 0
        %1617 = vmatpush1.bf16.msra.mxu0 0
        %1618 = vmatprep.subr.bf16.mxu0 %v1599
        %1619 = vmatpush1.bf16.msra.mxu0 %v1596
        %1620 = vmatprep.subr.bf16.mxu0 0
        %1621 = vmatpush2.bf16.msra.mxu0 0
        %1622 = vmatprep.subr.bf16.mxu0 0
        %1623 = vmatpush2.bf16.msra.mxu0 0
        %1624 = vmatprep.subr.bf16.mxu0 0
        %1625 = vmatpush2.bf16.msra.mxu0 0
        %1626 = vmatprep.subr.bf16.mxu0 0
        %1627 = vmatpush2.bf16.msra.mxu0 0
        %1628 = vmatprep.subr.bf16.mxu0 0
        %1629 = vmatpush2.bf16.msra.mxu0 0
        %1630 = vmatprep.subr.bf16.mxu0 0
        %1631 = vmatpush2.bf16.msra.mxu0 0
        %1632 = vmatprep.subr.bf16.mxu0 0
        %1633 = vmatpush2.bf16.msra.mxu0 0
        %1634 = vmatprep.subr.bf16.mxu0 0
        %1635 = vmatpush2.bf16.msra.mxu0 0
        %1636 = vmatprep.mubr.bf16.mxu0 0
        %1637 = vmatmul.mubr.bf16.gmra.mxu0 %v1590
        %v1638 = vpop.f32.mrf.mxu0
        %v1639 = vadd.f32 0.0, %v1638
        %v1640 = vpop.f32.mrf.mxu0
        %v1641 = vadd.f32 0.0, %v1640
        %v1642 = vpop.f32.mrf.mxu0
        %v1643 = vadd.f32 0.0, %v1642
        %v1644 = vpop.f32.mrf.mxu0
        %v1645 = vadd.f32 0.0, %v1644
        %1646 = vmatprep.mubr.bf16.mxu0 0
        %1647 = vmatmul.mubr.bf16.gmra.mxu0 %v1593
        %v1648 = vpop.f32.mrf.mxu0
        %v1649 = vadd.f32 0.0, %v1648
        %v1650 = vpop.f32.mrf.mxu0
        %v1651 = vadd.f32 0.0, %v1650
        %v1652 = vpop.f32.mrf.mxu0
        %v1653 = vadd.f32 0.0, %v1652
        %v1654 = vpop.f32.mrf.mxu0
        %v1655 = vadd.f32 0.0, %v1654
        %1656 = vdwg.mxu0
        %1657 = vmatprep.subr.bf16.mxu0 0
        %1658 = vmatpush1.bf16.msra.mxu0 0
        %1659 = vmatprep.subr.bf16.mxu0 0
        %1660 = vmatpush1.bf16.msra.mxu0 0
        %1661 = vmatprep.subr.bf16.mxu0 0
        %1662 = vmatpush1.bf16.msra.mxu0 0
        %1663 = vmatprep.subr.bf16.mxu0 0
        %1664 = vmatpush1.bf16.msra.mxu0 0
        %1665 = vmatprep.subr.bf16.mxu0 0
        %1666 = vmatpush1.bf16.msra.mxu0 0
        %1667 = vmatprep.subr.bf16.mxu0 0
        %1668 = vmatpush1.bf16.msra.mxu0 0
        %1669 = vmatprep.subr.bf16.mxu0 0
        %1670 = vmatpush1.bf16.msra.mxu0 0
        %1671 = vmatprep.subr.bf16.mxu0 0
        %1672 = vmatpush1.bf16.msra.mxu0 %v1602
        %1673 = vmatprep.subr.bf16.mxu0 0
        %1674 = vmatpush2.bf16.msra.mxu0 0
        %1675 = vmatprep.subr.bf16.mxu0 0
        %1676 = vmatpush2.bf16.msra.mxu0 0
        %1677 = vmatprep.subr.bf16.mxu0 0
        %1678 = vmatpush2.bf16.msra.mxu0 0
        %1679 = vmatprep.subr.bf16.mxu0 0
        %1680 = vmatpush2.bf16.msra.mxu0 0
        %1681 = vmatprep.subr.bf16.mxu0 0
        %1682 = vmatpush2.bf16.msra.mxu0 0
        %1683 = vmatprep.subr.bf16.mxu0 0
        %1684 = vmatpush2.bf16.msra.mxu0 0
        %1685 = vmatprep.subr.bf16.mxu0 0
        %1686 = vmatpush2.bf16.msra.mxu0 0
        %1687 = vmatprep.subr.bf16.mxu0 0
        %1688 = vmatpush2.bf16.msra.mxu0 0
        %1689 = vmatprep.mubr.bf16.mxu0 0
        %1690 = vmatmul.mubr.bf16.gmra.mxu0 %v1590
        %v1691 = vpop.f32.mrf.mxu0
        %v1692 = vadd.f32 0.0, %v1691
        %v1693 = vpop.f32.mrf.mxu0
        %v1694 = vpop.f32.mrf.mxu0
        %v1695 = vadd.f32 0.0, %v1694
        %v1696 = vpop.f32.mrf.mxu0
        %1697 = vmatprep.mubr.bf16.mxu0 0
        %1698 = vmatmul.mubr.bf16.gmra.mxu0 %v1593
        %v1699 = vpop.f32.mrf.mxu0
        %v1700 = vadd.f32 0.0, %v1699
        %v1701 = vpop.f32.mrf.mxu0
        %v1702 = vpop.f32.mrf.mxu0
        %v1703 = vadd.f32 0.0, %v1702
        %v1704 = vpop.f32.mrf.mxu0
        %1705 = vdwg.mxu0
        %v1706 = vadd.f32 %v1535, %v1639
        %v1707 = vadd.f32 %v1536, %v1641
        %v1708 = vadd.f32 %v1537, %v1692
        %v1709 = vadd.f32 %v1538, %v1643
        %v1710 = vadd.f32 %v1539, %v1645
        %v1711 = vadd.f32 %v1540, %v1695
        %v1712 = vadd.f32 %v1541, %v1649
        %v1713 = vadd.f32 %v1542, %v1651
        %v1714 = vadd.f32 %v1543, %v1700
        %v1715 = vadd.f32 %v1544, %v1653
        %v1716 = vadd.f32 %v1545, %v1655
        %v1717 = vadd.f32 %v1546, %v1703
        %v1718 = vld [vmem:[%s225] sm:$0xff]
        %v1719 = vld [vmem:[%s225 + $0x8] sm:$0xff]
        %v1720 = vld [vmem:[%s225 + $0x10] sm:$0xff]
        %v1721 = vld [vmem:[%s225 + $0x18] sm:$0xff]
        %1723 = vset.pattern.permute.xlu0 0
        %1724 = vperm.xlu0 %1723, %v1718
        %v1725 = vpop.permute.xlu0 %1724
        %1728 = vset.pattern.permute.xlu0 0
        %1729 = vperm.xlu0 %1728, %v1719
        %v1730 = vpop.permute.xlu0 %1729
        %1733 = vset.pattern.permute.xlu0 0
        %1734 = vperm.xlu0 %1733, %v1720
        %v1735 = vpop.permute.xlu0 %1734
        %1738 = vset.pattern.permute.xlu0 0
        %1739 = vperm.xlu0 %1738, %v1721
        %v1740 = vpop.permute.xlu0 %1739
        %v1742 = vadd.f32 %v1706, %v1725
        %v1743 = vadd.f32 %v1707, %v1725
        %v1744 = vadd.f32 %v1708, %v1725
        %v1745 = vadd.f32 %v1709, %v1730
        %v1746 = vadd.f32 %v1710, %v1730
        %v1747 = vadd.f32 %v1711, %v1730
        %v1748 = vadd.f32 %v1712, %v1735
        %v1749 = vadd.f32 %v1713, %v1735
        %v1750 = vadd.f32 %v1714, %v1735
        %v1751 = vadd.f32 %v1715, %v1740
        %v1752 = vadd.f32 %v1716, %v1740
        %v1753 = vadd.f32 %v1717, %v1740
        %1754 = vst [vmem:[%s209] sm:$0xff] %v1742
        %1755 = vst [vmem:[%s209 + $0x8] sm:$0xff] %v1743
        %vm1756 = vcmask 556032
        %1757 = vst.msk [vmem:[%s209 + $0x10] sm:$0xff] %vm1756, %v1744
        %1758 = vst [vmem:[%s209 + $0x18] sm:$0xff] %v1745
        %1759 = vst [vmem:[%s209 + $0x20] sm:$0xff] %v1746
        %1760 = vst.msk [vmem:[%s209 + $0x28] sm:$0xff] %vm1756, %v1747
        %1761 = vst [vmem:[%s209 + $0x30] sm:$0xff] %v1748
        %1762 = vst [vmem:[%s209 + $0x38] sm:$0xff] %v1749
        %1763 = vst.msk [vmem:[%s209 + $0x40] sm:$0xff] %vm1756, %v1750
        %1764 = vst [vmem:[%s209 + $0x48] sm:$0xff] %v1751
        %1765 = vst [vmem:[%s209 + $0x50] sm:$0xff] %v1752
        %1766 = vst.msk [vmem:[%s209 + $0x58] sm:$0xff] %vm1756, %v1753
        %s1767 = sand.u32 %s117, 1
        %s1768 = scalar_lea.sflag [#allocation3], %s1767
        %s1769 = sand.u32 %s117, 1
        %s1770 = smul.addr %s1769, 96
        %s1771 = scalar_lea.vmem [#allocation2], %s1770
        // Predicated region
        $region33: #{tpu_custom_call.1} parent=31 // pred_check
          %p1772 = pneg %p127
        $region34: #{tpu_custom_call.1} parent=31 // pred_check_branch
          %1774 = sbr.rel (%p1772) target = $region36
        $region35: #{tpu_custom_call.1} parent=31 // pred_region
          %s1775 = smul.u32 4, %s22
          %s1777 = ssub.s32 1536, 1536
          %1778 = vsyncadd %s1768, %s1777
          %s1779 = smul.addr %s1775, 3
          %s1780 = smul.addr %s21, 12
          %s1781 = sadd.s32 %s1779, %s1780
          %s1782 = smul.addr %s1781, 128
          %s1783 = scalar_lea.hbm %s3, %s1782
          %s1784 = sshll.u32 %s1771, 4
          %s1785 = int_to_ptr.vmem [resolvable:$true] %s1784
          %1790 = dma.vmem_to_hbm [thread:$0]  %s1785, 1536, %s1783, %s1768, 384, 384, 24
        $region36: #{tpu_custom_call.1} parent=31 // pred_fallthru
          _
      $region32: #{tpu_custom_call.1} parent=5 // pred_fallthru
        _
      %p1791 = scmp.le.s32.totalorder 2, %s12
      // Predicated region
      $region37: #{tpu_custom_call.1} parent=5 // pred_check
        %p1792 = pneg %p1791
      $region38: #{tpu_custom_call.1} parent=5 // pred_check_branch
        %1794 = sbr.rel (%p1792) target = $region40
      $region39: #{tpu_custom_call.1} parent=5 // pred_region
        %s1795 = ssub.s32 %s12, 2
        // Predicated region
        $region41: #{tpu_custom_call.1} parent=39 // pred_check
          %p1796 = pneg %p133
        $region42: #{tpu_custom_call.1} parent=39 // pred_check_branch
          %1798 = sbr.rel (%p1796) target = $region44
        $region43: #{tpu_custom_call.1} parent=39 // pred_region
          %s1799 = sand.u32 %s118, 1
          %s1800 = scalar_lea.sflag [#allocation3], %s1799
          %s1801 = sand.u32 %s118, 1
          %s1802 = smul.addr %s1801, 96
          %s1803 = scalar_lea.vmem [#allocation2], %s1802
          %1804 = dma.done %s1800, 1536
        $region44: #{tpu_custom_call.1} parent=39 // pred_fallthru
          _
      $region40: #{tpu_custom_call.1} parent=5 // pred_fallthru
        _
    $region6: #{tpu_custom_call.1} parent=1 // loop_footer
      %s16 = sadd.s32 1, %s12
    $region7: #{tpu_custom_call.1} parent=1 // loop_footer_branch
      %11 = sbr.rel target = $region3
    $region8: #{tpu_custom_call.1} parent=1 // loop_exit
      _
    %1805 = vsyncpa [#allocation3], 1
    %s1806 = scalar_lea.sflag [#allocation3], 1
    %1807 = vsyncpa %s1806, 1

</llo_original>
